<compile_context>
chip_gen: v7x
topology: tpu7x:2x2x1
jax: 0.10.0
libtpu: 0.0.40
codegen_flags: <defaults>
</compile_context>

<pallas_src>
import functools
import math

import jax
import jax.numpy as jnp
from jax.experimental import pallas as pl
from jax.experimental.pallas import tpu as pltpu


def _layernorm(x, gamma, beta, eps=1e-5):
    mean = jnp.mean(x, axis=-1, keepdims=True)
    var = jnp.mean((x - mean) ** 2, axis=-1, keepdims=True)
    return (x - mean) * jax.lax.rsqrt(var + eps) * gamma + beta


def _gelu_tanh(x):
    # GELU with tanh approximation (matches nn.GELU(approximate='tanh'))
    c = 0.7978845608028654  # sqrt(2/pi)
    return 0.5 * x * (1.0 + jnp.tanh(c * (x + 0.044715 * x * x * x)))


def block_kernel(
        # auto-pipelined inputs
        x_ref, mask_ref,
        ln1_g_ref, ln1_b_ref, b_qkv_ref, b_ap_ref,
        ln2_g_ref, ln2_b_ref, b_fc_ref, b_mp_ref,
        # raw HBM refs (bf16 weights, single-buffered manually)
        w_qkv_hbm, w_ap_hbm, w_fc_hbm, w_mp_hbm,
        # output
        out_ref,
        # scratch
        q_s, k_s, v_s, w_qkv_s, w_ap_s, w_fc_s, w_mp_s, dma_sems,
        *, num_heads, q_tile):
    j = pl.program_id(1)
    _, T, C = x_ref.shape
    H = num_heads
    hd = C // H
    tq = q_tile
    scale = 1.0 / math.sqrt(hd)
    bf16 = jnp.bfloat16

    # ---- once per batch row: load weights + LN1 + fused QKV projection ----
    @pl.when(j == 0)
    def _prologue():
        copies = [
            pltpu.make_async_copy(w_qkv_hbm, w_qkv_s, dma_sems.at[0]),
            pltpu.make_async_copy(w_ap_hbm, w_ap_s, dma_sems.at[1]),
            pltpu.make_async_copy(w_fc_hbm, w_fc_s, dma_sems.at[2]),
            pltpu.make_async_copy(w_mp_hbm, w_mp_s, dma_sems.at[3]),
        ]
        for c in copies:   # overlap the 4 weight DMAs with each other
            c.start()
        for c in copies:
            c.wait()

        x_full = x_ref[0]                                              # (T, C) f32
        x_ln1 = _layernorm(x_full, ln1_g_ref[...], ln1_b_ref[...])
        qkv = jnp.dot(x_ln1.astype(bf16), w_qkv_s[...],
                      preferred_element_type=jnp.float32) + b_qkv_ref[...]   # (T, 3C) f32
        # Store Q/K/V head-major (H, T, hd) bf16 so each q-tile is one batched
        # contraction with no per-tile K/V relayout.
        q_s[...] = jnp.transpose(qkv[:, 0 * C:1 * C].reshape(T, H, hd), (1, 0, 2)).astype(bf16)
        k_s[...] = jnp.transpose(qkv[:, 1 * C:2 * C].reshape(T, H, hd), (1, 0, 2)).astype(bf16)
        v_s[...] = jnp.transpose(qkv[:, 2 * C:3 * C].reshape(T, H, hd), (1, 0, 2)).astype(bf16)

    q_off = pl.multiple_of(j * tq, tq)

    # ---- causal attention for this query tile, all heads batched ----
    q = q_s[:, pl.ds(q_off, tq), :]                                    # (H, tq, hd) bf16
    k = k_s[...]                                                       # (H, T, hd)  bf16
    v = v_s[...]                                                       # (H, T, hd)  bf16
    scores = jnp.einsum("hqd,hkd->hqk", q, k,
                        preferred_element_type=jnp.float32) * scale    # (H, tq, T) f32
    scores = scores + mask_ref[...]            # additive causal bias, broadcasts over H
    m = jnp.max(scores, axis=-1, keepdims=True)
    p = jnp.exp(scores - m)
    p = p * pl.reciprocal(jnp.sum(p, axis=-1, keepdims=True), approx=True)
    ctx = jnp.einsum("hqk,hkd->hqd", p.astype(bf16), v,
                     preferred_element_type=jnp.float32)               # (H, tq, hd) f32
    attn = jnp.transpose(ctx, (1, 0, 2)).reshape(tq, C)                # (tq, C)

    attn = jnp.dot(attn.astype(bf16), w_ap_s[...],
                   preferred_element_type=jnp.float32) + b_ap_ref[...]

    x_tile = x_ref[0, pl.ds(q_off, tq), :]                             # (tq, C) f32
    x1 = x_tile + attn                                                 # first residual

    # ---- LN2 + MLP ----
    x_ln2 = _layernorm(x1, ln2_g_ref[...], ln2_b_ref[...])
    h = jnp.dot(x_ln2.astype(bf16), w_fc_s[...],
                preferred_element_type=jnp.float32) + b_fc_ref[...]    # (tq, 4C) f32
    h = _gelu_tanh(h)
    mlp = jnp.dot(h.astype(bf16), w_mp_s[...],
                  preferred_element_type=jnp.float32) + b_mp_ref[...]  # (tq, C) f32

    out_ref[0] = (x1 + mlp).astype(out_ref.dtype)                      # second residual


def transformer_block(x, params, *, num_heads, q_tile=128):
    B, T, C = x.shape
    assert C % num_heads == 0
    hd = C // num_heads
    tq = min(q_tile, T)
    assert T % tq == 0, "sequence length must be divisible by the query tile"
    nq = T // tq
    bf16 = jnp.bfloat16

    # Precomputed additive causal bias (0 visible / -1e30 masked): avoids
    # rebuilding (T,T) iotas + select per grid step and is NaN-safe.
    row = jax.lax.broadcasted_iota(jnp.int32, (T, T), 0)
    col = jax.lax.broadcasted_iota(jnp.int32, (T, T), 1)
    mask_bias = jnp.where(row >= col, 0.0, -1e30).astype(jnp.float32)

    # Big weights go to the MXU in bf16 (accumulation stays f32 in the kernel).
    w_qkv = params["w_qkv"].astype(bf16)
    w_ap = params["w_ap"].astype(bf16)
    w_fc = params["w_fc"].astype(bf16)
    w_mp = params["w_mp"].astype(bf16)

    def rep2d(r, c):   # small grid-invariant params (LN scales, biases)
        return pl.BlockSpec((r, c), lambda b, j: (0, 0))

    in_specs = [
        # x: full sequence for this batch row; block index is constant in j so
        # Pallas only DMAs it once per batch row (copy-skip).
        pl.BlockSpec((1, T, C), lambda b, j: (b, 0, 0)),
        # causal-bias rows for this query tile
        pl.BlockSpec((tq, T), lambda b, j: (j, 0)),
        rep2d(1, C), rep2d(1, C),              # ln1 gamma / beta
        rep2d(1, 3 * C), rep2d(1, C),          # qkv bias, attn-proj bias
        rep2d(1, C), rep2d(1, C),              # ln2 gamma / beta
        rep2d(1, 4 * C), rep2d(1, C),          # fc bias, mlp-proj bias
        # Weights stay in HBM (no 2x pipeline buffers); copied once per batch
        # row into single-buffered VMEM scratch inside the kernel.
        pl.BlockSpec(memory_space=pl.ANY),     # w_qkv
        pl.BlockSpec(memory_space=pl.ANY),     # w_ap
        pl.BlockSpec(memory_space=pl.ANY),     # w_fc
        pl.BlockSpec(memory_space=pl.ANY),     # w_mp
    ]

    kernel = functools.partial(block_kernel, num_heads=num_heads, q_tile=tq)

    return pl.pallas_call(
        kernel,
        out_shape=jax.ShapeDtypeStruct((B, T, C), x.dtype),
        grid_spec=pltpu.PrefetchScalarGridSpec(
            num_scalar_prefetch=0,
            grid=(B, nq),
            in_specs=in_specs,
            out_specs=pl.BlockSpec((1, tq, C), lambda b, j: (b, j, 0)),
            scratch_shapes=[
                pltpu.VMEM((num_heads, T, hd), bf16),   # Q (head-major)
                pltpu.VMEM((num_heads, T, hd), bf16),   # K
                pltpu.VMEM((num_heads, T, hd), bf16),   # V
                pltpu.VMEM((C, 3 * C), bf16),           # w_qkv
                pltpu.VMEM((C, C), bf16),               # w_ap
                pltpu.VMEM((C, 4 * C), bf16),           # w_fc
                pltpu.VMEM((4 * C, C), bf16),           # w_mp
                pltpu.SemaphoreType.DMA((4,)),
            ],
        ),
        # batch axis parallel (v7x megacore); q-tile axis "arbitrary" because
        # the per-batch QKV scratch is produced at j == 0 and reused.
        compiler_params=pltpu.CompilerParams(
            dimension_semantics=("parallel", "arbitrary")),
    )(x, mask_bias,
      params["ln1_g"], params["ln1_b"],
      params["b_qkv"], params["b_ap"],
      params["ln2_g"], params["ln2_b"],
      params["b_fc"], params["b_mp"],
      w_qkv, w_ap, w_fc, w_mp)


def block_reference(x, params, *, num_heads):
    """Pure-JAX f32 reference of the PyTorch Block forward."""
    B, T, C = x.shape
    hd = C // num_heads
    h1 = _layernorm(x, params["ln1_g"], params["ln1_b"])
    qkv = h1 @ params["w_qkv"] + params["b_qkv"]
    q, k, v = jnp.split(qkv, 3, axis=-1)

    def split_heads(z):
        return z.reshape(B, T, num_heads, hd).transpose(0, 2, 1, 3)

    q, k, v = split_heads(q), split_heads(k), split_heads(v)
    s = (q @ jnp.swapaxes(k, -1, -2)) / math.sqrt(hd)
    mask = jnp.tril(jnp.ones((T, T), bool))
    s = jnp.where(mask, s, -jnp.inf)
    p = jax.nn.softmax(s, axis=-1)
    o = (p @ v).transpose(0, 2, 1, 3).reshape(B, T, C)
    x1 = x + o @ params["w_ap"] + params["b_ap"]
    h2 = _layernorm(x1, params["ln2_g"], params["ln2_b"])
    f = _gelu_tanh(h2 @ params["w_fc"] + params["b_fc"])
    return x1 + f @ params["w_mp"] + params["b_mp"]


def init_params(key, emb_dim):
    C = emb_dim
    ks = jax.random.split(key, 8)
    std = 0.02
    return {
        "ln1_g": jnp.ones((1, C), jnp.float32),
        "ln1_b": jnp.zeros((1, C), jnp.float32),
        "w_qkv": std * jax.random.normal(ks[0], (C, 3 * C), jnp.float32),
        "b_qkv": std * jax.random.normal(ks[1], (1, 3 * C), jnp.float32),
        "w_ap":  std * jax.random.normal(ks[2], (C, C), jnp.float32),
        "b_ap":  std * jax.random.normal(ks[3], (1, C), jnp.float32),
        "ln2_g": jnp.ones((1, C), jnp.float32),
        "ln2_b": jnp.zeros((1, C), jnp.float32),
        "w_fc":  std * jax.random.normal(ks[4], (C, 4 * C), jnp.float32),
        "b_fc":  std * jax.random.normal(ks[5], (1, 4 * C), jnp.float32),
        "w_mp":  std * jax.random.normal(ks[6], (4 * C, C), jnp.float32),
        "b_mp":  std * jax.random.normal(ks[7], (1, C), jnp.float32),
    }


if __name__ == "__main__":
    B, T, C, H = 2, 8, 32, 4   # batch, seq (== block_size), emb_dim, num_heads

    key = jax.random.PRNGKey(0)
    k_x, k_p = jax.random.split(key)
    x = jax.random.normal(k_x, (B, T, C), jnp.float32)
    params = init_params(k_p, C)

    out = transformer_block(x, params, num_heads=H)
    out = jax.block_until_ready(out)

    assert out.shape == (B, T, C)
    assert bool(jnp.all(jnp.isfinite(out)))

    # bf16 matmuls + approx reciprocal => loose tolerance vs the f32 reference.
    ref = block_reference(x, params, num_heads=H)
    assert bool(jnp.allclose(out, ref, atol=5e-2, rtol=5e-2)), (
        float(jnp.max(jnp.abs(out - ref))))

    print("KERNEL_OK")
</pallas_src>

<mosaic_0001>
module attributes {stable_mosaic.version = 11 : i64} {
  func.func @block_kernel(%arg0: i32, %arg1: i32, %arg2: memref<1x8x32xf32, #tpu.memory_space<vmem>>, %arg3: memref<8x8xf32, #tpu.memory_space<vmem>>, %arg4: memref<1x32xf32, #tpu.memory_space<vmem>>, %arg5: memref<1x32xf32, #tpu.memory_space<vmem>>, %arg6: memref<1x96xf32, #tpu.memory_space<vmem>>, %arg7: memref<1x32xf32, #tpu.memory_space<vmem>>, %arg8: memref<1x32xf32, #tpu.memory_space<vmem>>, %arg9: memref<1x32xf32, #tpu.memory_space<vmem>>, %arg10: memref<1x128xf32, #tpu.memory_space<vmem>>, %arg11: memref<1x32xf32, #tpu.memory_space<vmem>>, %arg12: memref<32x96xbf16, #tpu.memory_space<any>>, %arg13: memref<32x32xbf16, #tpu.memory_space<any>>, %arg14: memref<32x128xbf16, #tpu.memory_space<any>>, %arg15: memref<128x32xbf16, #tpu.memory_space<any>>, %arg16: memref<1x8x32xf32, #tpu.memory_space<vmem>>, %arg17: memref<4x8x8xbf16, #tpu.memory_space<vmem>>, %arg18: memref<4x8x8xbf16, #tpu.memory_space<vmem>>, %arg19: memref<4x8x8xbf16, #tpu.memory_space<vmem>>, %arg20: memref<32x96xbf16, #tpu.memory_space<vmem>>, %arg21: memref<32x32xbf16, #tpu.memory_space<vmem>>, %arg22: memref<32x128xbf16, #tpu.memory_space<vmem>>, %arg23: memref<128x32xbf16, #tpu.memory_space<vmem>>, %arg24: memref<4x!tpu.dma_semaphore, #tpu.memory_space<semaphore_mem>>) attributes {dimension_semantics = [#tpu.dimension_semantics<parallel>, #tpu.dimension_semantics<arbitrary>], iteration_bounds = array<i64: 2, 1>, scalar_prefetch = 0 : i64, scratch_operands = 8 : i64, tpu.core_type = #tpu.core_type<tc>, window_params = [{transform_indices = @transform_0, window_bounds = array<i64: 1, 8, 32>}, {transform_indices = @transform_1, window_bounds = array<i64: 8, 8>}, {pipeline_mode = #tpu.pipeline_mode<synchronous>, transform_indices = @transform_2, window_bounds = array<i64: 1, 32>}, {pipeline_mode = #tpu.pipeline_mode<synchronous>, transform_indices = @transform_3, window_bounds = array<i64: 1, 32>}, {pipeline_mode = #tpu.pipeline_mode<synchronous>, transform_indices = @transform_4, window_bounds = array<i64: 1, 96>}, {pipeline_mode = #tpu.pipeline_mode<synchronous>, transform_indices = @transform_5, window_bounds = array<i64: 1, 32>}, {pipeline_mode = #tpu.pipeline_mode<synchronous>, transform_indices = @transform_6, window_bounds = array<i64: 1, 32>}, {pipeline_mode = #tpu.pipeline_mode<synchronous>, transform_indices = @transform_7, window_bounds = array<i64: 1, 32>}, {pipeline_mode = #tpu.pipeline_mode<synchronous>, transform_indices = @transform_8, window_bounds = array<i64: 1, 128>}, {pipeline_mode = #tpu.pipeline_mode<synchronous>, transform_indices = @transform_9, window_bounds = array<i64: 1, 32>}, {}, {}, {}, {}, {transform_indices = @transform_14, window_bounds = array<i64: 1, 8, 32>}]} {
    %c0_i32 = arith.constant 0 : i32
    %0 = arith.cmpi eq, %arg1, %c0_i32 : i32
    %1 = arith.extui %0 : i1 to i32
    %c0_i32_0 = arith.constant 0 : i32
    %2 = arith.cmpi ne, %1, %c0_i32_0 : i32
    scf.if %2 {
      %c0_i32_47 = arith.constant 0 : i32
      %93 = tpu.memref_slice %arg24[%c0_i32_47] : memref<4x!tpu.dma_semaphore, #tpu.memory_space<semaphore_mem>> -> memref<1x!tpu.dma_semaphore, #tpu.memory_space<semaphore_mem>>
      %94 = tpu.memref_squeeze %93 : memref<1x!tpu.dma_semaphore, #tpu.memory_space<semaphore_mem>> -> memref<!tpu.dma_semaphore, #tpu.memory_space<semaphore_mem>>
      tpu.enqueue_dma source(%arg12 : memref<32x96xbf16, #tpu.memory_space<any>>) target(%arg20 : memref<32x96xbf16, #tpu.memory_space<vmem>>) target_semaphore(%94 : memref<!tpu.dma_semaphore, #tpu.memory_space<semaphore_mem>>)
      %c1_i32 = arith.constant 1 : i32
      %95 = tpu.memref_slice %arg24[%c1_i32] : memref<4x!tpu.dma_semaphore, #tpu.memory_space<semaphore_mem>> -> memref<1x!tpu.dma_semaphore, #tpu.memory_space<semaphore_mem>>
      %96 = tpu.memref_squeeze %95 : memref<1x!tpu.dma_semaphore, #tpu.memory_space<semaphore_mem>> -> memref<!tpu.dma_semaphore, #tpu.memory_space<semaphore_mem>>
      tpu.enqueue_dma source(%arg13 : memref<32x32xbf16, #tpu.memory_space<any>>) target(%arg21 : memref<32x32xbf16, #tpu.memory_space<vmem>>) target_semaphore(%96 : memref<!tpu.dma_semaphore, #tpu.memory_space<semaphore_mem>>)
      %c2_i32 = arith.constant 2 : i32
      %97 = tpu.memref_slice %arg24[%c2_i32] : memref<4x!tpu.dma_semaphore, #tpu.memory_space<semaphore_mem>> -> memref<1x!tpu.dma_semaphore, #tpu.memory_space<semaphore_mem>>
      %98 = tpu.memref_squeeze %97 : memref<1x!tpu.dma_semaphore, #tpu.memory_space<semaphore_mem>> -> memref<!tpu.dma_semaphore, #tpu.memory_space<semaphore_mem>>
      tpu.enqueue_dma source(%arg14 : memref<32x128xbf16, #tpu.memory_space<any>>) target(%arg22 : memref<32x128xbf16, #tpu.memory_space<vmem>>) target_semaphore(%98 : memref<!tpu.dma_semaphore, #tpu.memory_space<semaphore_mem>>)
      %c3_i32 = arith.constant 3 : i32
      %99 = tpu.memref_slice %arg24[%c3_i32] : memref<4x!tpu.dma_semaphore, #tpu.memory_space<semaphore_mem>> -> memref<1x!tpu.dma_semaphore, #tpu.memory_space<semaphore_mem>>
      %100 = tpu.memref_squeeze %99 : memref<1x!tpu.dma_semaphore, #tpu.memory_space<semaphore_mem>> -> memref<!tpu.dma_semaphore, #tpu.memory_space<semaphore_mem>>
      tpu.enqueue_dma source(%arg15 : memref<128x32xbf16, #tpu.memory_space<any>>) target(%arg23 : memref<128x32xbf16, #tpu.memory_space<vmem>>) target_semaphore(%100 : memref<!tpu.dma_semaphore, #tpu.memory_space<semaphore_mem>>)
      %c0_i32_48 = arith.constant 0 : i32
      %101 = tpu.memref_slice %arg24[%c0_i32_48] : memref<4x!tpu.dma_semaphore, #tpu.memory_space<semaphore_mem>> -> memref<1x!tpu.dma_semaphore, #tpu.memory_space<semaphore_mem>>
      %102 = tpu.memref_squeeze %101 : memref<1x!tpu.dma_semaphore, #tpu.memory_space<semaphore_mem>> -> memref<!tpu.dma_semaphore, #tpu.memory_space<semaphore_mem>>
      tpu.wait_dma2 semaphore(%102 : memref<!tpu.dma_semaphore, #tpu.memory_space<semaphore_mem>>) src(%arg12 : memref<32x96xbf16, #tpu.memory_space<any>>) dst(%arg20 : memref<32x96xbf16, #tpu.memory_space<vmem>>)
      %c1_i32_49 = arith.constant 1 : i32
      %103 = tpu.memref_slice %arg24[%c1_i32_49] : memref<4x!tpu.dma_semaphore, #tpu.memory_space<semaphore_mem>> -> memref<1x!tpu.dma_semaphore, #tpu.memory_space<semaphore_mem>>
      %104 = tpu.memref_squeeze %103 : memref<1x!tpu.dma_semaphore, #tpu.memory_space<semaphore_mem>> -> memref<!tpu.dma_semaphore, #tpu.memory_space<semaphore_mem>>
      tpu.wait_dma2 semaphore(%104 : memref<!tpu.dma_semaphore, #tpu.memory_space<semaphore_mem>>) src(%arg13 : memref<32x32xbf16, #tpu.memory_space<any>>) dst(%arg21 : memref<32x32xbf16, #tpu.memory_space<vmem>>)
      %c2_i32_50 = arith.constant 2 : i32
      %105 = tpu.memref_slice %arg24[%c2_i32_50] : memref<4x!tpu.dma_semaphore, #tpu.memory_space<semaphore_mem>> -> memref<1x!tpu.dma_semaphore, #tpu.memory_space<semaphore_mem>>
      %106 = tpu.memref_squeeze %105 : memref<1x!tpu.dma_semaphore, #tpu.memory_space<semaphore_mem>> -> memref<!tpu.dma_semaphore, #tpu.memory_space<semaphore_mem>>
      tpu.wait_dma2 semaphore(%106 : memref<!tpu.dma_semaphore, #tpu.memory_space<semaphore_mem>>) src(%arg14 : memref<32x128xbf16, #tpu.memory_space<any>>) dst(%arg22 : memref<32x128xbf16, #tpu.memory_space<vmem>>)
      %c3_i32_51 = arith.constant 3 : i32
      %107 = tpu.memref_slice %arg24[%c3_i32_51] : memref<4x!tpu.dma_semaphore, #tpu.memory_space<semaphore_mem>> -> memref<1x!tpu.dma_semaphore, #tpu.memory_space<semaphore_mem>>
      %108 = tpu.memref_squeeze %107 : memref<1x!tpu.dma_semaphore, #tpu.memory_space<semaphore_mem>> -> memref<!tpu.dma_semaphore, #tpu.memory_space<semaphore_mem>>
      tpu.wait_dma2 semaphore(%108 : memref<!tpu.dma_semaphore, #tpu.memory_space<semaphore_mem>>) src(%arg15 : memref<128x32xbf16, #tpu.memory_space<any>>) dst(%arg23 : memref<128x32xbf16, #tpu.memory_space<vmem>>)
      %c0_52 = arith.constant 0 : index
      %c0_53 = arith.constant 0 : index
      %c0_54 = arith.constant 0 : index
      %109 = vector.load %arg2[%c0_52, %c0_53, %c0_54] : memref<1x8x32xf32, #tpu.memory_space<vmem>>, vector<1x8x32xf32>
      %110 = vector.shape_cast %109 : vector<1x8x32xf32> to vector<8x32xf32>
      %c0_55 = arith.constant 0 : index
      %c0_56 = arith.constant 0 : index
      %111 = vector.load %arg4[%c0_55, %c0_56] : memref<1x32xf32, #tpu.memory_space<vmem>>, vector<1x32xf32>
      %c0_57 = arith.constant 0 : index
      %c0_58 = arith.constant 0 : index
      %112 = vector.load %arg5[%c0_57, %c0_58] : memref<1x32xf32, #tpu.memory_space<vmem>>, vector<1x32xf32>
      %cst_59 = arith.constant dense<0.000000e+00> : vector<8xf32>
      %113 = vector.multi_reduction <add>, %110, %cst_59 [1] : vector<8x32xf32> to vector<8xf32>
      %114 = vector.shape_cast %113 : vector<8xf32> to vector<8x1xf32>
      %cst_60 = arith.constant 3.200000e+01 : f32
      %115 = vector.broadcast %cst_60 : f32 to vector<8x1xf32>
      %116 = arith.divf %114, %115 : vector<8x1xf32>
      %117 = vector.broadcast %116 : vector<8x1xf32> to vector<8x32xf32>
      %118 = arith.subf %110, %117 : vector<8x32xf32>
      %119 = arith.mulf %118, %118 : vector<8x32xf32>
      %cst_61 = arith.constant dense<0.000000e+00> : vector<8xf32>
      %120 = vector.multi_reduction <add>, %119, %cst_61 [1] : vector<8x32xf32> to vector<8xf32>
      %121 = vector.shape_cast %120 : vector<8xf32> to vector<8x1xf32>
      %cst_62 = arith.constant 3.200000e+01 : f32
      %122 = vector.broadcast %cst_62 : f32 to vector<8x1xf32>
      %123 = arith.divf %121, %122 : vector<8x1xf32>
      %124 = vector.broadcast %116 : vector<8x1xf32> to vector<8x32xf32>
      %125 = arith.subf %110, %124 : vector<8x32xf32>
      %cst_63 = arith.constant 9.99999974E-6 : f32
      %126 = vector.broadcast %cst_63 : f32 to vector<8x1xf32>
      %127 = arith.addf %123, %126 : vector<8x1xf32>
      %128 = math.rsqrt %127 : vector<8x1xf32>
      %129 = vector.broadcast %128 : vector<8x1xf32> to vector<8x32xf32>
      %130 = arith.mulf %125, %129 : vector<8x32xf32>
      %131 = vector.broadcast %111 : vector<1x32xf32> to vector<8x32xf32>
      %132 = arith.mulf %130, %131 : vector<8x32xf32>
      %133 = vector.broadcast %112 : vector<1x32xf32> to vector<8x32xf32>
      %134 = arith.addf %132, %133 : vector<8x32xf32>
      %135 = arith.truncf %134 : vector<8x32xf32> to vector<8x32xbf16>
      %c0_64 = arith.constant 0 : index
      %c0_65 = arith.constant 0 : index
      %136 = vector.load %arg20[%c0_64, %c0_65] : memref<32x96xbf16, #tpu.memory_space<vmem>>, vector<32x96xbf16>
      %cst_66 = arith.constant dense<0.000000e+00> : vector<8x96xf32>
      %137 = tpu.matmul %135, %136, %cst_66 {dimension_numbers = #tpu.dot_dimension_numbers<[1], [0], [0], [1], [0, 0, 1, 1], [], []>} : vector<8x32xbf16>, vector<32x96xbf16>, vector<8x96xf32> -> vector<8x96xf32>
      %c0_67 = arith.constant 0 : index
      %c0_68 = arith.constant 0 : index
      %138 = vector.load %arg6[%c0_67, %c0_68] : memref<1x96xf32, #tpu.memory_space<vmem>>, vector<1x96xf32>
      %139 = vector.broadcast %138 : vector<1x96xf32> to vector<8x96xf32>
      %140 = arith.addf %137, %139 : vector<8x96xf32>
      %141 = vector.extract_strided_slice %140 {offsets = [0, 0], sizes = [8, 32], strides = [1, 1]} : vector<8x96xf32> to vector<8x32xf32>
      %142 = vector.shape_cast %141 : vector<8x32xf32> to vector<8x4x8xf32>
      %143 = tpu.transpose %142, [1, 0, 2] : vector<8x4x8xf32> -> vector<4x8x8xf32>
      %144 = arith.truncf %143 : vector<4x8x8xf32> to vector<4x8x8xbf16>
      %c0_69 = arith.constant 0 : index
      %c0_70 = arith.constant 0 : index
      %c0_71 = arith.constant 0 : index
      %145 = vector.load %arg17[%c0_69, %c0_70, %c0_71] : memref<4x8x8xbf16, #tpu.memory_space<vmem>>, vector<4x8x8xbf16>
      tpu.vector_store %arg17[%c0_69, %c0_70, %c0_71], %144 {strides = array<i32>} : memref<4x8x8xbf16, #tpu.memory_space<vmem>>, vector<4x8x8xbf16>,
      %146 = vector.extract_strided_slice %140 {offsets = [0, 32], sizes = [8, 32], strides = [1, 1]} : vector<8x96xf32> to vector<8x32xf32>
      %147 = vector.shape_cast %146 : vector<8x32xf32> to vector<8x4x8xf32>
      %148 = tpu.transpose %147, [1, 0, 2] : vector<8x4x8xf32> -> vector<4x8x8xf32>
      %149 = arith.truncf %148 : vector<4x8x8xf32> to vector<4x8x8xbf16>
      %c0_72 = arith.constant 0 : index
      %c0_73 = arith.constant 0 : index
      %c0_74 = arith.constant 0 : index
      %150 = vector.load %arg18[%c0_72, %c0_73, %c0_74] : memref<4x8x8xbf16, #tpu.memory_space<vmem>>, vector<4x8x8xbf16>
      tpu.vector_store %arg18[%c0_72, %c0_73, %c0_74], %149 {strides = array<i32>} : memref<4x8x8xbf16, #tpu.memory_space<vmem>>, vector<4x8x8xbf16>,
      %151 = vector.extract_strided_slice %140 {offsets = [0, 64], sizes = [8, 32], strides = [1, 1]} : vector<8x96xf32> to vector<8x32xf32>
      %152 = vector.shape_cast %151 : vector<8x32xf32> to vector<8x4x8xf32>
      %153 = tpu.transpose %152, [1, 0, 2] : vector<8x4x8xf32> -> vector<4x8x8xf32>
      %154 = arith.truncf %153 : vector<4x8x8xf32> to vector<4x8x8xbf16>
      %c0_75 = arith.constant 0 : index
      %c0_76 = arith.constant 0 : index
      %c0_77 = arith.constant 0 : index
      %155 = vector.load %arg19[%c0_75, %c0_76, %c0_77] : memref<4x8x8xbf16, #tpu.memory_space<vmem>>, vector<4x8x8xbf16>
      tpu.vector_store %arg19[%c0_75, %c0_76, %c0_77], %154 {strides = array<i32>} : memref<4x8x8xbf16, #tpu.memory_space<vmem>>, vector<4x8x8xbf16>,
    } else {
    }
    %c8_i32 = arith.constant 8 : i32
    %3 = arith.muli %arg1, %c8_i32 : i32
    %4 = tpu.assume_multiple %3, 8 : i32
    %c0 = arith.constant 0 : index
    %5 = arith.index_cast %4 : i32 to index
    %c0_1 = arith.constant 0 : index
    %6 = vector.load %arg17[%c0, %5, %c0_1] : memref<4x8x8xbf16, #tpu.memory_space<vmem>>, vector<4x8x8xbf16>
    %c0_2 = arith.constant 0 : index
    %c0_3 = arith.constant 0 : index
    %c0_4 = arith.constant 0 : index
    %7 = vector.load %arg18[%c0_2, %c0_3, %c0_4] : memref<4x8x8xbf16, #tpu.memory_space<vmem>>, vector<4x8x8xbf16>
    %c0_5 = arith.constant 0 : index
    %c0_6 = arith.constant 0 : index
    %c0_7 = arith.constant 0 : index
    %8 = vector.load %arg19[%c0_5, %c0_6, %c0_7] : memref<4x8x8xbf16, #tpu.memory_space<vmem>>, vector<4x8x8xbf16>
    "tpu.trace_start"() <{level = 10 : i32, message = "hqd,hkd->hqk"}> : () -> ()
    %cst = arith.constant dense<0.000000e+00> : vector<4x8x8xf32>
    %9 = tpu.matmul %6, %7, %cst {dimension_numbers = #tpu.dot_dimension_numbers<[2], [2], [1], [1], [0, 0, 0, 1, 1, 1], [0], [0]>} : vector<4x8x8xbf16>, vector<4x8x8xbf16>, vector<4x8x8xf32> -> vector<4x8x8xf32>
    "tpu.trace_stop"() : () -> ()
    %cst_8 = arith.constant 0.353553385 : f32
    %10 = vector.broadcast %cst_8 : f32 to vector<4x8x8xf32>
    %11 = arith.mulf %9, %10 : vector<4x8x8xf32>
    %c0_9 = arith.constant 0 : index
    %c0_10 = arith.constant 0 : index
    %12 = vector.load %arg3[%c0_9, %c0_10] : memref<8x8xf32, #tpu.memory_space<vmem>>, vector<8x8xf32>
    %13 = vector.shape_cast %12 : vector<8x8xf32> to vector<1x8x8xf32>
    %14 = vector.broadcast %13 : vector<1x8x8xf32> to vector<4x8x8xf32>
    %15 = arith.addf %11, %14 : vector<4x8x8xf32>
    %cst_11 = arith.constant dense<0xFF800000> : vector<4x8xf32>
    %16 = vector.multi_reduction <maximumf>, %15, %cst_11 [2] : vector<4x8x8xf32> to vector<4x8xf32>
    %17 = vector.shape_cast %16 : vector<4x8xf32> to vector<4x8x1xf32>
    %18 = vector.broadcast %17 : vector<4x8x1xf32> to vector<4x8x8xf32>
    %19 = arith.subf %15, %18 : vector<4x8x8xf32>
    %20 = math.exp %19 : vector<4x8x8xf32>
    %cst_12 = arith.constant dense<0.000000e+00> : vector<4x8xf32>
    %21 = vector.multi_reduction <add>, %20, %cst_12 [2] : vector<4x8x8xf32> to vector<4x8xf32>
    %22 = vector.shape_cast %21 : vector<4x8xf32> to vector<4x8x1xf32>
    %23 = tpu.reciprocal %22 {approx = true} : vector<4x8x1xf32> -> vector<4x8x1xf32>
    %24 = vector.broadcast %23 : vector<4x8x1xf32> to vector<4x8x8xf32>
    %25 = arith.mulf %20, %24 : vector<4x8x8xf32>
    %26 = arith.truncf %25 : vector<4x8x8xf32> to vector<4x8x8xbf16>
    "tpu.trace_start"() <{level = 10 : i32, message = "hqk,hkd->hqd"}> : () -> ()
    %cst_13 = arith.constant dense<0.000000e+00> : vector<4x8x8xf32>
    %27 = tpu.matmul %26, %8, %cst_13 {dimension_numbers = #tpu.dot_dimension_numbers<[2], [1], [1], [2], [0, 0, 0, 1, 1, 2], [0], [0]>} : vector<4x8x8xbf16>, vector<4x8x8xbf16>, vector<4x8x8xf32> -> vector<4x8x8xf32>
    "tpu.trace_stop"() : () -> ()
    %28 = tpu.transpose %27, [1, 0, 2] : vector<4x8x8xf32> -> vector<8x4x8xf32>
    %29 = vector.shape_cast %28 : vector<8x4x8xf32> to vector<8x32xf32>
    %30 = arith.truncf %29 : vector<8x32xf32> to vector<8x32xbf16>
    %c0_14 = arith.constant 0 : index
    %c0_15 = arith.constant 0 : index
    %31 = vector.load %arg21[%c0_14, %c0_15] : memref<32x32xbf16, #tpu.memory_space<vmem>>, vector<32x32xbf16>
    %cst_16 = arith.constant dense<0.000000e+00> : vector<8x32xf32>
    %32 = tpu.matmul %30, %31, %cst_16 {dimension_numbers = #tpu.dot_dimension_numbers<[1], [0], [0], [1], [0, 0, 1, 1], [], []>} : vector<8x32xbf16>, vector<32x32xbf16>, vector<8x32xf32> -> vector<8x32xf32>
    %c0_17 = arith.constant 0 : index
    %c0_18 = arith.constant 0 : index
    %33 = vector.load %arg7[%c0_17, %c0_18] : memref<1x32xf32, #tpu.memory_space<vmem>>, vector<1x32xf32>
    %34 = vector.broadcast %33 : vector<1x32xf32> to vector<8x32xf32>
    %35 = arith.addf %32, %34 : vector<8x32xf32>
    %c0_19 = arith.constant 0 : index
    %36 = arith.index_cast %4 : i32 to index
    %c0_20 = arith.constant 0 : index
    %37 = vector.load %arg2[%c0_19, %36, %c0_20] : memref<1x8x32xf32, #tpu.memory_space<vmem>>, vector<1x8x32xf32>
    %38 = vector.shape_cast %37 : vector<1x8x32xf32> to vector<8x32xf32>
    %39 = arith.addf %38, %35 : vector<8x32xf32>
    %c0_21 = arith.constant 0 : index
    %c0_22 = arith.constant 0 : index
    %40 = vector.load %arg8[%c0_21, %c0_22] : memref<1x32xf32, #tpu.memory_space<vmem>>, vector<1x32xf32>
    %c0_23 = arith.constant 0 : index
    %c0_24 = arith.constant 0 : index
    %41 = vector.load %arg9[%c0_23, %c0_24] : memref<1x32xf32, #tpu.memory_space<vmem>>, vector<1x32xf32>
    %cst_25 = arith.constant dense<0.000000e+00> : vector<8xf32>
    %42 = vector.multi_reduction <add>, %39, %cst_25 [1] : vector<8x32xf32> to vector<8xf32>
    %43 = vector.shape_cast %42 : vector<8xf32> to vector<8x1xf32>
    %cst_26 = arith.constant 3.200000e+01 : f32
    %44 = vector.broadcast %cst_26 : f32 to vector<8x1xf32>
    %45 = arith.divf %43, %44 : vector<8x1xf32>
    %46 = vector.broadcast %45 : vector<8x1xf32> to vector<8x32xf32>
    %47 = arith.subf %39, %46 : vector<8x32xf32>
    %48 = arith.mulf %47, %47 : vector<8x32xf32>
    %cst_27 = arith.constant dense<0.000000e+00> : vector<8xf32>
    %49 = vector.multi_reduction <add>, %48, %cst_27 [1] : vector<8x32xf32> to vector<8xf32>
    %50 = vector.shape_cast %49 : vector<8xf32> to vector<8x1xf32>
    %cst_28 = arith.constant 3.200000e+01 : f32
    %51 = vector.broadcast %cst_28 : f32 to vector<8x1xf32>
    %52 = arith.divf %50, %51 : vector<8x1xf32>
    %53 = vector.broadcast %45 : vector<8x1xf32> to vector<8x32xf32>
    %54 = arith.subf %39, %53 : vector<8x32xf32>
    %cst_29 = arith.constant 9.99999974E-6 : f32
    %55 = vector.broadcast %cst_29 : f32 to vector<8x1xf32>
    %56 = arith.addf %52, %55 : vector<8x1xf32>
    %57 = math.rsqrt %56 : vector<8x1xf32>
    %58 = vector.broadcast %57 : vector<8x1xf32> to vector<8x32xf32>
    %59 = arith.mulf %54, %58 : vector<8x32xf32>
    %60 = vector.broadcast %40 : vector<1x32xf32> to vector<8x32xf32>
    %61 = arith.mulf %59, %60 : vector<8x32xf32>
    %62 = vector.broadcast %41 : vector<1x32xf32> to vector<8x32xf32>
    %63 = arith.addf %61, %62 : vector<8x32xf32>
    %64 = arith.truncf %63 : vector<8x32xf32> to vector<8x32xbf16>
    %c0_30 = arith.constant 0 : index
    %c0_31 = arith.constant 0 : index
    %65 = vector.load %arg22[%c0_30, %c0_31] : memref<32x128xbf16, #tpu.memory_space<vmem>>, vector<32x128xbf16>
    %cst_32 = arith.constant dense<0.000000e+00> : vector<8x128xf32>
    %66 = tpu.matmul %64, %65, %cst_32 {dimension_numbers = #tpu.dot_dimension_numbers<[1], [0], [0], [1], [0, 0, 1, 1], [], []>} : vector<8x32xbf16>, vector<32x128xbf16>, vector<8x128xf32> -> vector<8x128xf32>
    %c0_33 = arith.constant 0 : index
    %c0_34 = arith.constant 0 : index
    %67 = vector.load %arg10[%c0_33, %c0_34] : memref<1x128xf32, #tpu.memory_space<vmem>>, vector<1x128xf32>
    %68 = vector.broadcast %67 : vector<1x128xf32> to vector<8x128xf32>
    %69 = arith.addf %66, %68 : vector<8x128xf32>
    %cst_35 = arith.constant 5.000000e-01 : f32
    %70 = vector.broadcast %cst_35 : f32 to vector<8x128xf32>
    %71 = arith.mulf %70, %69 : vector<8x128xf32>
    %cst_36 = arith.constant 4.471500e-02 : f32
    %72 = vector.broadcast %cst_36 : f32 to vector<8x128xf32>
    %73 = arith.mulf %72, %69 : vector<8x128xf32>
    %74 = arith.mulf %73, %69 : vector<8x128xf32>
    %75 = arith.mulf %74, %69 : vector<8x128xf32>
    %76 = arith.addf %69, %75 : vector<8x128xf32>
    %cst_37 = arith.constant 0.797884583 : f32
    %77 = vector.broadcast %cst_37 : f32 to vector<8x128xf32>
    %78 = arith.mulf %77, %76 : vector<8x128xf32>
    %79 = math.tanh %78 : vector<8x128xf32>
    %cst_38 = arith.constant 1.000000e+00 : f32
    %80 = vector.broadcast %cst_38 : f32 to vector<8x128xf32>
    %81 = arith.addf %80, %79 : vector<8x128xf32>
    %82 = arith.mulf %71, %81 : vector<8x128xf32>
    %83 = arith.truncf %82 : vector<8x128xf32> to vector<8x128xbf16>
    %c0_39 = arith.constant 0 : index
    %c0_40 = arith.constant 0 : index
    %84 = vector.load %arg23[%c0_39, %c0_40] : memref<128x32xbf16, #tpu.memory_space<vmem>>, vector<128x32xbf16>
    %cst_41 = arith.constant dense<0.000000e+00> : vector<8x32xf32>
    %85 = tpu.matmul %83, %84, %cst_41 {dimension_numbers = #tpu.dot_dimension_numbers<[1], [0], [0], [1], [0, 0, 1, 1], [], []>} : vector<8x128xbf16>, vector<128x32xbf16>, vector<8x32xf32> -> vector<8x32xf32>
    %c0_42 = arith.constant 0 : index
    %c0_43 = arith.constant 0 : index
    %86 = vector.load %arg11[%c0_42, %c0_43] : memref<1x32xf32, #tpu.memory_space<vmem>>, vector<1x32xf32>
    %87 = vector.broadcast %86 : vector<1x32xf32> to vector<8x32xf32>
    %88 = arith.addf %85, %87 : vector<8x32xf32>
    %89 = arith.addf %39, %88 : vector<8x32xf32>
    %c0_44 = arith.constant 0 : index
    %c0_45 = arith.constant 0 : index
    %c0_46 = arith.constant 0 : index
    %90 = vector.load %arg16[%c0_44, %c0_45, %c0_46] : memref<1x8x32xf32, #tpu.memory_space<vmem>>, vector<1x8x32xf32>
    %91 = vector.shape_cast %90 : vector<1x8x32xf32> to vector<8x32xf32>
    %92 = vector.shape_cast %89 : vector<8x32xf32> to vector<1x8x32xf32>
    tpu.vector_store %arg16[%c0_44, %c0_45, %c0_46], %92 {strides = array<i32>} : memref<1x8x32xf32, #tpu.memory_space<vmem>>, vector<1x8x32xf32>,
    return
  }
  func.func @transform_0(%arg0: i32, %arg1: i32) -> (i32, i32, i32) {
    %c0_i32 = arith.constant 0 : i32
    %c0_i32_0 = arith.constant 0 : i32
    %c0_i32_1 = arith.constant 0 : i32
    return %arg0, %c0_i32, %c0_i32_0 : i32, i32, i32
  }
  func.func @transform_1(%arg0: i32, %arg1: i32) -> (i32, i32) {
    %c0_i32 = arith.constant 0 : i32
    %c0_i32_0 = arith.constant 0 : i32
    return %arg1, %c0_i32 : i32, i32
  }
  func.func @transform_2(%arg0: i32, %arg1: i32) -> (i32, i32) {
    %c0_i32 = arith.constant 0 : i32
    %c0_i32_0 = arith.constant 0 : i32
    %c0_i32_1 = arith.constant 0 : i32
    return %c0_i32, %c0_i32_0 : i32, i32
  }
  func.func @transform_3(%arg0: i32, %arg1: i32) -> (i32, i32) {
    %c0_i32 = arith.constant 0 : i32
    %c0_i32_0 = arith.constant 0 : i32
    %c0_i32_1 = arith.constant 0 : i32
    return %c0_i32, %c0_i32_0 : i32, i32
  }
  func.func @transform_4(%arg0: i32, %arg1: i32) -> (i32, i32) {
    %c0_i32 = arith.constant 0 : i32
    %c0_i32_0 = arith.constant 0 : i32
    %c0_i32_1 = arith.constant 0 : i32
    return %c0_i32, %c0_i32_0 : i32, i32
  }
  func.func @transform_5(%arg0: i32, %arg1: i32) -> (i32, i32) {
    %c0_i32 = arith.constant 0 : i32
    %c0_i32_0 = arith.constant 0 : i32
    %c0_i32_1 = arith.constant 0 : i32
    return %c0_i32, %c0_i32_0 : i32, i32
  }
  func.func @transform_6(%arg0: i32, %arg1: i32) -> (i32, i32) {
    %c0_i32 = arith.constant 0 : i32
    %c0_i32_0 = arith.constant 0 : i32
    %c0_i32_1 = arith.constant 0 : i32
    return %c0_i32, %c0_i32_0 : i32, i32
  }
  func.func @transform_7(%arg0: i32, %arg1: i32) -> (i32, i32) {
    %c0_i32 = arith.constant 0 : i32
    %c0_i32_0 = arith.constant 0 : i32
    %c0_i32_1 = arith.constant 0 : i32
    return %c0_i32, %c0_i32_0 : i32, i32
  }
  func.func @transform_8(%arg0: i32, %arg1: i32) -> (i32, i32) {
    %c0_i32 = arith.constant 0 : i32
    %c0_i32_0 = arith.constant 0 : i32
    %c0_i32_1 = arith.constant 0 : i32
    return %c0_i32, %c0_i32_0 : i32, i32
  }
  func.func @transform_9(%arg0: i32, %arg1: i32) -> (i32, i32) {
    %c0_i32 = arith.constant 0 : i32
    %c0_i32_0 = arith.constant 0 : i32
    %c0_i32_1 = arith.constant 0 : i32
    return %c0_i32, %c0_i32_0 : i32, i32
  }
  func.func @transform_14(%arg0: i32, %arg1: i32) -> (i32, i32, i32) {
    %c0_i32 = arith.constant 0 : i32
    %c0_i32_0 = arith.constant 0 : i32
    return %arg0, %arg1, %c0_i32 : i32, i32, i32
  }
}

</mosaic_0001>

<llo_original>
// kernel: tpu_custom_call.1
$region0: #{tpu_custom_call.1}
  #allocation0 [shape = 'u32[]', space=smem, size = 0x4, offset = 0x4, fixed_abs, tag = 'smem constant byte address 0x4 - core index']
  #allocation1 [shape = 'u32[144,128]{1,0:T(1,128)}', space=vmem, size = 0x12000, scoped, tag = 'internal scratch']
  #allocation2 [shape = 'bf16[4,8,8]{2,1,0:T(8,128)(2,1)}', space=vmem, size = 0x2000, scoped, tag = 'scratch operand']
  #allocation3 [shape = 'bf16[4,8,8]{2,1,0:T(8,128)(2,1)}', space=vmem, size = 0x2000, scoped, tag = 'scratch operand']
  #allocation4 [shape = 'bf16[4,8,8]{2,1,0:T(8,128)(2,1)}', space=vmem, size = 0x2000, scoped, tag = 'scratch operand']
  #allocation5 [shape = 'bf16[32,96]{1,0:T(16,128)(2,1)}', space=vmem, size = 0x2000, scoped, tag = 'scratch operand']
  #allocation6 [shape = 'bf16[32,32]{1,0:T(16,128)(2,1)}', space=vmem, size = 0x2000, scoped, tag = 'scratch operand']
  #allocation7 [shape = 'bf16[32,128]{1,0:T(16,128)(2,1)}', space=vmem, size = 0x2000, scoped, tag = 'scratch operand']
  #allocation8 [shape = 'bf16[128,32]{1,0:T(16,128)(2,1)}', space=vmem, size = 0x8000, scoped, tag = 'scratch operand']
  #allocation9 [shape = 's32[4]{0}', space=sflag, size = 0x10, scoped, tag = 'scratch operand']
  #allocation12 [shape = 's32[]', space=sflag, size = 0x4, offset = 0, fixed_abs, tag = 'sflag constant byte address 0x0 - dummy sync flag']
  #allocation13 [shape = 's32[]', space=sflag, size = 0x4, offset = 0, fixed_abs, tag = 'sflag constant byte address 0x0 - dummy sync flag']
  #allocation14 [shape = 's32[]', space=sflag, size = 0x4, offset = 0, fixed_abs, tag = 'sflag constant byte address 0x0 - dummy sync flag']
  #allocation15 [shape = 's32[]', space=sflag, size = 0x4, offset = 0, fixed_abs, tag = 'sflag constant byte address 0x0 - dummy sync flag']
  %s0 = inlined_call_operand.vmem [shape: f32[2,8,32], index: 0, kind: input, shape index: {}]
  %s1 = inlined_call_operand.vmem [shape: f32[8,8], index: 1, kind: input, shape index: {}]
  %s2 = inlined_call_operand.vmem [shape: f32[1,32], index: 2, kind: input, shape index: {}]
  %s3 = inlined_call_operand.vmem [shape: f32[1,32], index: 3, kind: input, shape index: {}]
  %s4 = inlined_call_operand.vmem [shape: f32[1,96], index: 4, kind: input, shape index: {}]
  %s5 = inlined_call_operand.vmem [shape: f32[1,32], index: 5, kind: input, shape index: {}]
  %s6 = inlined_call_operand.vmem [shape: f32[1,32], index: 6, kind: input, shape index: {}]
  %s7 = inlined_call_operand.vmem [shape: f32[1,32], index: 7, kind: input, shape index: {}]
  %s8 = inlined_call_operand.vmem [shape: f32[1,128], index: 8, kind: input, shape index: {}]
  %s9 = inlined_call_operand.vmem [shape: f32[1,32], index: 9, kind: input, shape index: {}]
  %s10 = inlined_call_operand.vmem [shape: bf16[32,96], index: 10, kind: input, shape index: {}]
  %s11 = inlined_call_operand.vmem [shape: bf16[32,32], index: 11, kind: input, shape index: {}]
  %s12 = inlined_call_operand.vmem [shape: bf16[32,128], index: 12, kind: input, shape index: {}]
  %s13 = inlined_call_operand.vmem [shape: bf16[128,32], index: 13, kind: input, shape index: {}]
  %s14 = inlined_call_operand.hbm [shape: f32[2,8,32], index: 14, kind: output, shape index: {}]
  %s15 = sld [smem:[#allocation0]]
  $region213: #{tpu_custom_call.1} parent=0
    _
  %s17 = ssub.s32 1, %s15
  %s18 = scalar_select 0, %s17, %s15
  $region1: #{tpu_custom_call.1} parent=0
    #allocation10 [shape = 'u8[8192]{0}', space=vmem, size = 0x2000, scoped, tag = 'output window, operand 0']
    #allocation11 [shape = 's32[2]{0}', space=sflag, size = 0x8, scoped, tag = 'scoped memory for tpu_custom_call.1']
    %19 = vsyncpa [#allocation11], 0
    %s20 = scalar_lea.sflag [#allocation11], 1
    %21 = vsyncpa %s20, 0
    loop: start=0, step=1, limit=4
    $region2: #{tpu_custom_call.1} parent=1 // loop_pre_header
      _
    $region3: #{tpu_custom_call.1} parent=1 // loop_header
      %s23 = sphi 0, %s27
      %p24 = scmp.ge.s32.totalorder %s23, 4
      %s30 = sphi 0, %s42
      %s31 = sphi 0, %s38
      %s32 = sphi 0, %s30
      %s33 = sphi 0, %s31
      %s34 = sphi 0, %s32
      %s35 = sphi 0, %s33
      %s45 = sphi 0, %s47
      %s48 = sphi 0, %s45
      %s49 = sphi 0, %s48
      %s65 = sphi 0, %s49
      %s71 = sphi 0, %s73
      %s74 = sphi 0, %s71
      %s75 = sphi 0, %s74
      %s91 = sphi 0, %s75
      %s95 = sphi 0, %s95
      %s97 = sphi 0, %s95
      %s98 = sphi 0, %s97
      %s112 = sphi 0, %s98
      %s116 = sphi 0, %s116
      %s118 = sphi 0, %s116
      %s119 = sphi 0, %s118
      %s133 = sphi 0, %s119
      %s137 = sphi 0, %s137
      %s139 = sphi 0, %s137
      %s140 = sphi 0, %s139
      %s154 = sphi 0, %s140
      %s158 = sphi 0, %s158
      %s160 = sphi 0, %s158
      %s161 = sphi 0, %s160
      %s175 = sphi 0, %s161
      %s179 = sphi 0, %s179
      %s181 = sphi 0, %s179
      %s182 = sphi 0, %s181
      %s196 = sphi 0, %s182
      %s200 = sphi 0, %s200
      %s202 = sphi 0, %s200
      %s203 = sphi 0, %s202
      %s217 = sphi 0, %s203
      %s221 = sphi 0, %s221
      %s223 = sphi 0, %s221
      %s224 = sphi 0, %s223
      %s238 = sphi 0, %s224
      %s242 = sphi 0, %s242
      %s244 = sphi 0, %s242
      %s245 = sphi 0, %s244
      %s259 = sphi 0, %s245
      %s267 = sphi 0, %s269
      %s270 = sphi 0, %s267
      %s271 = sphi 0, %s270
      %s287 = sphi 0, %s271
    $region4: #{tpu_custom_call.1} parent=1 // loop_header_branch
      %26 = sbr.rel (%p24) target = $region8
    $region5: #{tpu_custom_call.1} parent=1 // loop_body
      %s28 = ssub.s32 %s23, 1
      %s29 = ssub.s32 %s23, 2
      %s36 = sadd.s32 1, %s31
      %p37 = scmp.ge.s32.totalorder %s36, 1
      %s38 = scalar_select %p37, 0, %s36
      %s39 = sadd.s32 1, %s30
      %s40 = scalar_select %p37, %s39, %s30
      %p41 = scmp.ge.s32.totalorder %s40, 2
      %s42 = scalar_select %p41, 0, %s40
      %s43 = ssub.s32 %s30, %s42
      %p44 = scmp.eq.s32.totalorder %s43, 0
      %s46 = sadd.s32 %s45, 1
      %s47 = scalar_select %p44, %s45, %s46
      %p50 = pneg %p44
      %p51 = scmp.eq.s32.totalorder %s23, 1
      %p52 = por %p50, %p51
      %p53 = scmp.ne.s32.totalorder %s45, %s48
      %p54 = scmp.eq.s32.totalorder %s23, 0
      %p55 = por %p53, %p54
      %p56 = scmp.ne.s32.totalorder %s45, %s48
      %p57 = scmp.eq.s32.totalorder %s28, 1
      %p58 = por %p56, %p57
      %p59 = scmp.ne.s32.totalorder %s48, %s49
      %p60 = scmp.eq.s32.totalorder %s28, 0
      %p61 = por %p59, %p60
      %p62 = scmp.ne.s32.totalorder %s48, %s49
      %p63 = scmp.eq.s32.totalorder %s29, 1
      %p64 = por %p62, %p63
      %p66 = scmp.ne.s32.totalorder %s49, %s65
      %p67 = scmp.eq.s32.totalorder %s29, 0
      %p68 = por %p66, %p67
      %s69 = ssub.s32 %s31, %s38
      %p70 = scmp.eq.s32.totalorder %s69, 0
      %s72 = sadd.s32 %s71, 1
      %s73 = scalar_select %p70, %s71, %s72
      %p76 = pneg %p70
      %p77 = scmp.eq.s32.totalorder %s23, 1
      %p78 = por %p76, %p77
      %p79 = scmp.ne.s32.totalorder %s71, %s74
      %p80 = scmp.eq.s32.totalorder %s23, 0
      %p81 = por %p79, %p80
      %p82 = scmp.ne.s32.totalorder %s71, %s74
      %p83 = scmp.eq.s32.totalorder %s28, 1
      %p84 = por %p82, %p83
      %p85 = scmp.ne.s32.totalorder %s74, %s75
      %p86 = scmp.eq.s32.totalorder %s28, 0
      %p87 = por %p85, %p86
      %p88 = scmp.ne.s32.totalorder %s74, %s75
      %p89 = scmp.eq.s32.totalorder %s29, 1
      %p90 = por %p88, %p89
      %p92 = scmp.ne.s32.totalorder %s75, %s91
      %p93 = scmp.eq.s32.totalorder %s29, 0
      %p94 = por %p92, %p93
      %s96 = sadd.s32 %s95, 1
      %p99 = scmp.eq.s32.totalorder %s23, 1
      %p100 = scmp.ne.s32.totalorder %s95, %s97
      %p101 = scmp.eq.s32.totalorder %s23, 0
      %p102 = por %p100, %p101
      %p103 = scmp.ne.s32.totalorder %s95, %s97
      %p104 = scmp.eq.s32.totalorder %s28, 1
      %p105 = por %p103, %p104
      %p106 = scmp.ne.s32.totalorder %s97, %s98
      %p107 = scmp.eq.s32.totalorder %s28, 0
      %p108 = por %p106, %p107
      %p109 = scmp.ne.s32.totalorder %s97, %s98
      %p110 = scmp.eq.s32.totalorder %s29, 1
      %p111 = por %p109, %p110
      %p113 = scmp.ne.s32.totalorder %s98, %s112
      %p114 = scmp.eq.s32.totalorder %s29, 0
      %p115 = por %p113, %p114
      %s117 = sadd.s32 %s116, 1
      %p120 = scmp.eq.s32.totalorder %s23, 1
      %p121 = scmp.ne.s32.totalorder %s116, %s118
      %p122 = scmp.eq.s32.totalorder %s23, 0
      %p123 = por %p121, %p122
      %p124 = scmp.ne.s32.totalorder %s116, %s118
      %p125 = scmp.eq.s32.totalorder %s28, 1
      %p126 = por %p124, %p125
      %p127 = scmp.ne.s32.totalorder %s118, %s119
      %p128 = scmp.eq.s32.totalorder %s28, 0
      %p129 = por %p127, %p128
      %p130 = scmp.ne.s32.totalorder %s118, %s119
      %p131 = scmp.eq.s32.totalorder %s29, 1
      %p132 = por %p130, %p131
      %p134 = scmp.ne.s32.totalorder %s119, %s133
      %p135 = scmp.eq.s32.totalorder %s29, 0
      %p136 = por %p134, %p135
      %s138 = sadd.s32 %s137, 1
      %p141 = scmp.eq.s32.totalorder %s23, 1
      %p142 = scmp.ne.s32.totalorder %s137, %s139
      %p143 = scmp.eq.s32.totalorder %s23, 0
      %p144 = por %p142, %p143
      %p145 = scmp.ne.s32.totalorder %s137, %s139
      %p146 = scmp.eq.s32.totalorder %s28, 1
      %p147 = por %p145, %p146
      %p148 = scmp.ne.s32.totalorder %s139, %s140
      %p149 = scmp.eq.s32.totalorder %s28, 0
      %p150 = por %p148, %p149
      %p151 = scmp.ne.s32.totalorder %s139, %s140
      %p152 = scmp.eq.s32.totalorder %s29, 1
      %p153 = por %p151, %p152
      %p155 = scmp.ne.s32.totalorder %s140, %s154
      %p156 = scmp.eq.s32.totalorder %s29, 0
      %p157 = por %p155, %p156
      %s159 = sadd.s32 %s158, 1
      %p162 = scmp.eq.s32.totalorder %s23, 1
      %p163 = scmp.ne.s32.totalorder %s158, %s160
      %p164 = scmp.eq.s32.totalorder %s23, 0
      %p165 = por %p163, %p164
      %p166 = scmp.ne.s32.totalorder %s158, %s160
      %p167 = scmp.eq.s32.totalorder %s28, 1
      %p168 = por %p166, %p167
      %p169 = scmp.ne.s32.totalorder %s160, %s161
      %p170 = scmp.eq.s32.totalorder %s28, 0
      %p171 = por %p169, %p170
      %p172 = scmp.ne.s32.totalorder %s160, %s161
      %p173 = scmp.eq.s32.totalorder %s29, 1
      %p174 = por %p172, %p173
      %p176 = scmp.ne.s32.totalorder %s161, %s175
      %p177 = scmp.eq.s32.totalorder %s29, 0
      %p178 = por %p176, %p177
      %s180 = sadd.s32 %s179, 1
      %p183 = scmp.eq.s32.totalorder %s23, 1
      %p184 = scmp.ne.s32.totalorder %s179, %s181
      %p185 = scmp.eq.s32.totalorder %s23, 0
      %p186 = por %p184, %p185
      %p187 = scmp.ne.s32.totalorder %s179, %s181
      %p188 = scmp.eq.s32.totalorder %s28, 1
      %p189 = por %p187, %p188
      %p190 = scmp.ne.s32.totalorder %s181, %s182
      %p191 = scmp.eq.s32.totalorder %s28, 0
      %p192 = por %p190, %p191
      %p193 = scmp.ne.s32.totalorder %s181, %s182
      %p194 = scmp.eq.s32.totalorder %s29, 1
      %p195 = por %p193, %p194
      %p197 = scmp.ne.s32.totalorder %s182, %s196
      %p198 = scmp.eq.s32.totalorder %s29, 0
      %p199 = por %p197, %p198
      %s201 = sadd.s32 %s200, 1
      %p204 = scmp.eq.s32.totalorder %s23, 1
      %p205 = scmp.ne.s32.totalorder %s200, %s202
      %p206 = scmp.eq.s32.totalorder %s23, 0
      %p207 = por %p205, %p206
      %p208 = scmp.ne.s32.totalorder %s200, %s202
      %p209 = scmp.eq.s32.totalorder %s28, 1
      %p210 = por %p208, %p209
      %p211 = scmp.ne.s32.totalorder %s202, %s203
      %p212 = scmp.eq.s32.totalorder %s28, 0
      %p213 = por %p211, %p212
      %p214 = scmp.ne.s32.totalorder %s202, %s203
      %p215 = scmp.eq.s32.totalorder %s29, 1
      %p216 = por %p214, %p215
      %p218 = scmp.ne.s32.totalorder %s203, %s217
      %p219 = scmp.eq.s32.totalorder %s29, 0
      %p220 = por %p218, %p219
      %s222 = sadd.s32 %s221, 1
      %p225 = scmp.eq.s32.totalorder %s23, 1
      %p226 = scmp.ne.s32.totalorder %s221, %s223
      %p227 = scmp.eq.s32.totalorder %s23, 0
      %p228 = por %p226, %p227
      %p229 = scmp.ne.s32.totalorder %s221, %s223
      %p230 = scmp.eq.s32.totalorder %s28, 1
      %p231 = por %p229, %p230
      %p232 = scmp.ne.s32.totalorder %s223, %s224
      %p233 = scmp.eq.s32.totalorder %s28, 0
      %p234 = por %p232, %p233
      %p235 = scmp.ne.s32.totalorder %s223, %s224
      %p236 = scmp.eq.s32.totalorder %s29, 1
      %p237 = por %p235, %p236
      %p239 = scmp.ne.s32.totalorder %s224, %s238
      %p240 = scmp.eq.s32.totalorder %s29, 0
      %p241 = por %p239, %p240
      %s243 = sadd.s32 %s242, 1
      %p246 = scmp.eq.s32.totalorder %s23, 1
      %p247 = scmp.ne.s32.totalorder %s242, %s244
      %p248 = scmp.eq.s32.totalorder %s23, 0
      %p249 = por %p247, %p248
      %p250 = scmp.ne.s32.totalorder %s242, %s244
      %p251 = scmp.eq.s32.totalorder %s28, 1
      %p252 = por %p250, %p251
      %p253 = scmp.ne.s32.totalorder %s244, %s245
      %p254 = scmp.eq.s32.totalorder %s28, 0
      %p255 = por %p253, %p254
      %p256 = scmp.ne.s32.totalorder %s244, %s245
      %p257 = scmp.eq.s32.totalorder %s29, 1
      %p258 = por %p256, %p257
      %p260 = scmp.ne.s32.totalorder %s245, %s259
      %p261 = scmp.eq.s32.totalorder %s29, 0
      %p262 = por %p260, %p261
      %s263 = ssub.s32 %s30, %s42
      %s264 = ssub.s32 %s31, %s38
      %s265 = sor.u32 %s263, %s264
      %p266 = scmp.eq.s32.totalorder %s265, 0
      %s268 = sadd.s32 %s267, 1
      %s269 = scalar_select %p266, %s267, %s268
      %p272 = pneg %p266
      %p273 = scmp.eq.s32.totalorder %s23, 1
      %p274 = por %p272, %p273
      %p275 = scmp.ne.s32.totalorder %s267, %s270
      %p276 = scmp.eq.s32.totalorder %s23, 0
      %p277 = por %p275, %p276
      %p278 = scmp.ne.s32.totalorder %s267, %s270
      %p279 = scmp.eq.s32.totalorder %s28, 1
      %p280 = por %p278, %p279
      %p281 = scmp.ne.s32.totalorder %s270, %s271
      %p282 = scmp.eq.s32.totalorder %s28, 0
      %p283 = por %p281, %p282
      %p284 = scmp.ne.s32.totalorder %s270, %s271
      %p285 = scmp.eq.s32.totalorder %s29, 1
      %p286 = por %p284, %p285
      %p288 = scmp.ne.s32.totalorder %s271, %s287
      %p289 = scmp.eq.s32.totalorder %s29, 0
      %p290 = por %p288, %p289
      %p291 = scmp.le.s32.totalorder 1, %s23
      %p292 = scmp.lt.s32.totalorder %s23, 3
      %p293 = pnand %p291, %p292
      %p294 = pneg %p293
      // Predicated region
      $region9: #{tpu_custom_call.1} parent=5 // pred_check
        _
      $region10: #{tpu_custom_call.1} parent=5 // pred_check_branch
        %296 = sbr.rel (%p293) target = $region12
      $region11: #{tpu_custom_call.1} parent=5 // pred_region
        %s297 = ssub.s32 %s23, 1
        // Predicated region
        $region13: #{tpu_custom_call.1} parent=11 // pred_check
          %p298 = pneg %p87
        $region14: #{tpu_custom_call.1} parent=11 // pred_check_branch
          %300 = sbr.rel (%p298) target = $region16
        $region15: #{tpu_custom_call.1} parent=11 // pred_region
          %p301 = scmp.lt.s32.totalorder %s33, 0
          %s302 = scalar_select %p301, %s33, 0
          %s303 = smul.addr %s302, 8
          %s304 = scalar_lea.vmem %s1, %s303
        $region16: #{tpu_custom_call.1} parent=11 // pred_fallthru
          _
        // Predicated region
        $region17: #{tpu_custom_call.1} parent=11 // pred_check
          %p305 = pneg %p108
        $region18: #{tpu_custom_call.1} parent=11 // pred_check_branch
          %307 = sbr.rel (%p305) target = $region20
        $region19: #{tpu_custom_call.1} parent=11 // pred_region
          _
        $region20: #{tpu_custom_call.1} parent=11 // pred_fallthru
          _
        // Predicated region
        $region21: #{tpu_custom_call.1} parent=11 // pred_check
          %p308 = pneg %p129
        $region22: #{tpu_custom_call.1} parent=11 // pred_check_branch
          %310 = sbr.rel (%p308) target = $region24
        $region23: #{tpu_custom_call.1} parent=11 // pred_region
          _
        $region24: #{tpu_custom_call.1} parent=11 // pred_fallthru
          _
        // Predicated region
        $region25: #{tpu_custom_call.1} parent=11 // pred_check
          %p311 = pneg %p150
        $region26: #{tpu_custom_call.1} parent=11 // pred_check_branch
          %313 = sbr.rel (%p311) target = $region28
        $region27: #{tpu_custom_call.1} parent=11 // pred_region
          _
        $region28: #{tpu_custom_call.1} parent=11 // pred_fallthru
          _
        // Predicated region
        $region29: #{tpu_custom_call.1} parent=11 // pred_check
          %p314 = pneg %p171
        $region30: #{tpu_custom_call.1} parent=11 // pred_check_branch
          %316 = sbr.rel (%p314) target = $region32
        $region31: #{tpu_custom_call.1} parent=11 // pred_region
          _
        $region32: #{tpu_custom_call.1} parent=11 // pred_fallthru
          _
        // Predicated region
        $region33: #{tpu_custom_call.1} parent=11 // pred_check
          %p317 = pneg %p192
        $region34: #{tpu_custom_call.1} parent=11 // pred_check_branch
          %319 = sbr.rel (%p317) target = $region36
        $region35: #{tpu_custom_call.1} parent=11 // pred_region
          _
        $region36: #{tpu_custom_call.1} parent=11 // pred_fallthru
          _
        // Predicated region
        $region37: #{tpu_custom_call.1} parent=11 // pred_check
          %p320 = pneg %p213
        $region38: #{tpu_custom_call.1} parent=11 // pred_check_branch
          %322 = sbr.rel (%p320) target = $region40
        $region39: #{tpu_custom_call.1} parent=11 // pred_region
          _
        $region40: #{tpu_custom_call.1} parent=11 // pred_fallthru
          _
        // Predicated region
        $region41: #{tpu_custom_call.1} parent=11 // pred_check
          %p323 = pneg %p234
        $region42: #{tpu_custom_call.1} parent=11 // pred_check_branch
          %325 = sbr.rel (%p323) target = $region44
        $region43: #{tpu_custom_call.1} parent=11 // pred_region
          _
        $region44: #{tpu_custom_call.1} parent=11 // pred_fallthru
          _
        // Predicated region
        $region45: #{tpu_custom_call.1} parent=11 // pred_check
          %p326 = pneg %p255
        $region46: #{tpu_custom_call.1} parent=11 // pred_check_branch
          %328 = sbr.rel (%p326) target = $region48
        $region47: #{tpu_custom_call.1} parent=11 // pred_region
          _
        $region48: #{tpu_custom_call.1} parent=11 // pred_fallthru
          _
      $region12: #{tpu_custom_call.1} parent=5 // pred_fallthru
        _
      %p329 = scmp.lt.s32.totalorder %s23, 2
      // Predicated region
      $region49: #{tpu_custom_call.1} parent=5 // pred_check
        %p330 = pneg %p329
      $region50: #{tpu_custom_call.1} parent=5 // pred_check_branch
        %332 = sbr.rel (%p330) target = $region52
      $region51: #{tpu_custom_call.1} parent=5 // pred_region
        // Predicated region
        $region53: #{tpu_custom_call.1} parent=51 // pred_check
          %p333 = pneg %p55
        $region54: #{tpu_custom_call.1} parent=51 // pred_check_branch
          %335 = sbr.rel (%p333) target = $region56
        $region55: #{tpu_custom_call.1} parent=51 // pred_region
          %p336 = scmp.lt.s32.totalorder %s30, 1
          %s337 = scalar_select %p336, %s30, 1
          %s338 = smul.addr %s337, 8
          %s339 = scalar_lea.vmem %s0, %s338
        $region56: #{tpu_custom_call.1} parent=51 // pred_fallthru
          _
      $region52: #{tpu_custom_call.1} parent=5 // pred_fallthru
        _
      %p340 = scmp.le.s32.totalorder 1, %s23
      %p341 = scmp.lt.s32.totalorder %s23, 3
      %p342 = pnand %p340, %p341
      %p343 = pneg %p342
      // Predicated region
      $region57: #{tpu_custom_call.1} parent=5 // pred_check
        _
      $region58: #{tpu_custom_call.1} parent=5 // pred_check_branch
        %345 = sbr.rel (%p342) target = $region60
      $region59: #{tpu_custom_call.1} parent=5 // pred_region
        %s346 = ssub.s32 %s23, 1
        %p347 = scmp.lt.s32.totalorder %s32, 1
        %s348 = scalar_select %p347, %s32, 1
        %s349 = smul.addr %s348, 8
        %s350 = scalar_lea.vmem %s0, %s349
        %p351 = pneg %p61
        %p352 = pneg %p58
        %p353 = scmp.lt.s32.totalorder %s33, 0
        %s354 = scalar_select %p353, %s33, 0
        %s355 = smul.addr %s354, 8
        %s356 = scalar_lea.vmem %s1, %s355
        %p357 = pneg %p87
        %p358 = pneg %p84
        %p359 = pneg %p108
        %p360 = pneg %p105
        %p361 = pneg %p129
        %p362 = pneg %p126
        %p363 = pneg %p150
        %p364 = pneg %p147
        %p365 = pneg %p171
        %p366 = pneg %p168
        %p367 = pneg %p192
        %p368 = pneg %p189
        %p369 = pneg %p213
        %p370 = pneg %p210
        %p371 = pneg %p234
        %p372 = pneg %p231
        %p373 = pneg %p255
        %p374 = pneg %p252
        %p375 = pneg %p283
        %p376 = pneg %p280
        %s377 = sand.u32 %s270, 1
        %s378 = scalar_lea.sflag [#allocation11], %s377
        %s379 = sand.u32 %s270, 1
        %s380 = smul.addr %s379, 8
        %s381 = scalar_lea.vmem [#allocation10], %s380
        %p382 = scmp.lt.s32.totalorder %s32, 1
        %s383 = scalar_select %p382, %s32, 1
        %s384 = smul.addr %s383, 8
        %s385 = scalar_lea.vmem %s0, %s384
        %p386 = scmp.lt.s32.totalorder %s33, 0
        %s387 = scalar_select %p386, %s33, 0
        %s388 = smul.addr %s387, 8
        %s389 = scalar_lea.vmem %s1, %s388
        %p391 = scmp.eq.s32.totalorder %s33, 0
        // Predicated region
        $region61: #{tpu_custom_call.1} parent=59 // pred_check
          %p392 = pneg %p391
        $region62: #{tpu_custom_call.1} parent=59 // pred_check_branch
          %394 = sbr.rel (%p392) target = $region64
        $region63: #{tpu_custom_call.1} parent=59 // pred_region
          %p396 = scmp.lt.u32.totalorder 16, 8
          %p397 = pneg %p396
          // Predicated region
          $region65: #{tpu_custom_call.1} parent=63 // pred_check
            _
          $region66: #{tpu_custom_call.1} parent=63 // pred_check_branch
            %399 = sbr.rel (%p396) target = $region68
          $region67: #{tpu_custom_call.1} parent=63 // pred_region
            %s414 = sand.u32 16, 7
            %p415 = scmp.eq.s32.totalorder %s414, 0
            // Predicated region
            $region80: #{tpu_custom_call.1} parent=67 // pred_check
              %p416 = pneg %p415
            $region81: #{tpu_custom_call.1} parent=67 // pred_check_branch
              %418 = sbr.rel (%p416) target = $region83
            $region82: #{tpu_custom_call.1} parent=67 // pred_region
              loop: start=0, step=1, limit=1
              $region84: #{tpu_custom_call.1} parent=82 // loop_pre_header
                _
              $region85: #{tpu_custom_call.1} parent=82 // loop_header
                %s420 = sphi 0, %s424
                %p421 = scmp.ge.s32.totalorder %s420, 1
                %s425 = sphi %s10, %s10
                %s426 = sphi [#allocation5], [#allocation5]
              $region86: #{tpu_custom_call.1} parent=82 // loop_header_branch
                %423 = sbr.rel (%p421) target = $region90
              $region87: #{tpu_custom_call.1} parent=82 // loop_body
                %v427 = vld [vmem:[%s425] sm:$0xff]
                %428 = vst [vmem:[%s426] sm:$0xff] %v427
                %v429 = vld [vmem:[%s425 + $0x8] sm:$0xff]
                %430 = vst [vmem:[%s426 + $0x8] sm:$0xff] %v429
              $region88: #{tpu_custom_call.1} parent=82 // loop_footer
                %s424 = sadd.s32 1, %s420
              $region89: #{tpu_custom_call.1} parent=82 // loop_footer_branch
                %419 = sbr.rel target = $region85
              $region90: #{tpu_custom_call.1} parent=82 // loop_exit
                _
            $region83: #{tpu_custom_call.1} parent=67 // pred_fallthru
              _
            %p431 = pneg %p415
            // Predicated region
            $region91: #{tpu_custom_call.1} parent=67 // pred_check
              _
            $region92: #{tpu_custom_call.1} parent=67 // pred_check_branch
              %433 = sbr.rel (%p415) target = $region94
            $region93: #{tpu_custom_call.1} parent=67 // pred_region
              %s434 = sand.u32 16, 7
            $region94: #{tpu_custom_call.1} parent=67 // pred_fallthru
              _
          $region68: #{tpu_custom_call.1} parent=63 // pred_fallthru
            _
          // Predicated region
          $region69: #{tpu_custom_call.1} parent=63 // pred_check
            %p400 = pneg %p396
          $region70: #{tpu_custom_call.1} parent=63 // pred_check_branch
            %402 = sbr.rel (%p400) target = $region72
          $region71: #{tpu_custom_call.1} parent=63 // pred_region
            %s403 = sshllo.u32 0, 16
            loop: start=0, step=1, limit=1
            $region73: #{tpu_custom_call.1} parent=71 // loop_pre_header
              _
            $region74: #{tpu_custom_call.1} parent=71 // loop_header
              %s405 = sphi 0, %s409
              %p406 = scmp.ge.s32.totalorder %s405, 1
              %s410 = sphi %s10, %s10
              %s411 = sphi [#allocation5], [#allocation5]
            $region75: #{tpu_custom_call.1} parent=71 // loop_header_branch
              %408 = sbr.rel (%p406) target = $region79
            $region76: #{tpu_custom_call.1} parent=71 // loop_body
              %v412 = vld [vmem:[%s410] sm:%s403]
              %413 = vst [vmem:[%s411] sm:%s403] %v412
            $region77: #{tpu_custom_call.1} parent=71 // loop_footer
              %s409 = sadd.s32 1, %s405
            $region78: #{tpu_custom_call.1} parent=71 // loop_footer_branch
              %404 = sbr.rel target = $region74
            $region79: #{tpu_custom_call.1} parent=71 // loop_exit
              _
          $region72: #{tpu_custom_call.1} parent=63 // pred_fallthru
            _
          // Predicated region
          $region95: #{tpu_custom_call.1} parent=63 // pred_check
            _
          $region96: #{tpu_custom_call.1} parent=63 // pred_check_branch
            %437 = sbr.rel (0) target = $region98
          $region97: #{tpu_custom_call.1} parent=63 // pred_region
            %438 = vsyncadd [#allocation9], 256
          $region98: #{tpu_custom_call.1} parent=63 // pred_fallthru
            _
          %s439 = scalar_lea.sflag [#allocation9], 1
          %p441 = scmp.lt.u32.totalorder 16, 8
          %p442 = pneg %p441
          // Predicated region
          $region99: #{tpu_custom_call.1} parent=63 // pred_check
            _
          $region100: #{tpu_custom_call.1} parent=63 // pred_check_branch
            %444 = sbr.rel (%p441) target = $region102
          $region101: #{tpu_custom_call.1} parent=63 // pred_region
            %s459 = sand.u32 16, 7
            %p460 = scmp.eq.s32.totalorder %s459, 0
            // Predicated region
            $region114: #{tpu_custom_call.1} parent=101 // pred_check
              %p461 = pneg %p460
            $region115: #{tpu_custom_call.1} parent=101 // pred_check_branch
              %463 = sbr.rel (%p461) target = $region117
            $region116: #{tpu_custom_call.1} parent=101 // pred_region
              loop: start=0, step=1, limit=1
              $region118: #{tpu_custom_call.1} parent=116 // loop_pre_header
                _
              $region119: #{tpu_custom_call.1} parent=116 // loop_header
                %s465 = sphi 0, %s469
                %p466 = scmp.ge.s32.totalorder %s465, 1
                %s470 = sphi %s11, %s11
                %s471 = sphi [#allocation6], [#allocation6]
              $region120: #{tpu_custom_call.1} parent=116 // loop_header_branch
                %468 = sbr.rel (%p466) target = $region124
              $region121: #{tpu_custom_call.1} parent=116 // loop_body
                %v472 = vld [vmem:[%s470] sm:$0xff]
                %473 = vst [vmem:[%s471] sm:$0xff] %v472
                %v474 = vld [vmem:[%s470 + $0x8] sm:$0xff]
                %475 = vst [vmem:[%s471 + $0x8] sm:$0xff] %v474
              $region122: #{tpu_custom_call.1} parent=116 // loop_footer
                %s469 = sadd.s32 1, %s465
              $region123: #{tpu_custom_call.1} parent=116 // loop_footer_branch
                %464 = sbr.rel target = $region119
              $region124: #{tpu_custom_call.1} parent=116 // loop_exit
                _
            $region117: #{tpu_custom_call.1} parent=101 // pred_fallthru
              _
            %p476 = pneg %p460
            // Predicated region
            $region125: #{tpu_custom_call.1} parent=101 // pred_check
              _
            $region126: #{tpu_custom_call.1} parent=101 // pred_check_branch
              %478 = sbr.rel (%p460) target = $region128
            $region127: #{tpu_custom_call.1} parent=101 // pred_region
              %s479 = sand.u32 16, 7
            $region128: #{tpu_custom_call.1} parent=101 // pred_fallthru
              _
          $region102: #{tpu_custom_call.1} parent=63 // pred_fallthru
            _
          // Predicated region
          $region103: #{tpu_custom_call.1} parent=63 // pred_check
            %p445 = pneg %p441
          $region104: #{tpu_custom_call.1} parent=63 // pred_check_branch
            %447 = sbr.rel (%p445) target = $region106
          $region105: #{tpu_custom_call.1} parent=63 // pred_region
            %s448 = sshllo.u32 0, 16
            loop: start=0, step=1, limit=1
            $region107: #{tpu_custom_call.1} parent=105 // loop_pre_header
              _
            $region108: #{tpu_custom_call.1} parent=105 // loop_header
              %s450 = sphi 0, %s454
              %p451 = scmp.ge.s32.totalorder %s450, 1
              %s455 = sphi %s11, %s11
              %s456 = sphi [#allocation6], [#allocation6]
            $region109: #{tpu_custom_call.1} parent=105 // loop_header_branch
              %453 = sbr.rel (%p451) target = $region113
            $region110: #{tpu_custom_call.1} parent=105 // loop_body
              %v457 = vld [vmem:[%s455] sm:%s448]
              %458 = vst [vmem:[%s456] sm:%s448] %v457
            $region111: #{tpu_custom_call.1} parent=105 // loop_footer
              %s454 = sadd.s32 1, %s450
            $region112: #{tpu_custom_call.1} parent=105 // loop_footer_branch
              %449 = sbr.rel target = $region108
            $region113: #{tpu_custom_call.1} parent=105 // loop_exit
              _
          $region106: #{tpu_custom_call.1} parent=63 // pred_fallthru
            _
          // Predicated region
          $region129: #{tpu_custom_call.1} parent=63 // pred_check
            _
          $region130: #{tpu_custom_call.1} parent=63 // pred_check_branch
            %482 = sbr.rel (0) target = $region132
          $region131: #{tpu_custom_call.1} parent=63 // pred_region
            %483 = vsyncadd %s439, 256
          $region132: #{tpu_custom_call.1} parent=63 // pred_fallthru
            _
          %s484 = scalar_lea.sflag [#allocation9], 2
          %p486 = scmp.lt.u32.totalorder 16, 8
          %p487 = pneg %p486
          // Predicated region
          $region133: #{tpu_custom_call.1} parent=63 // pred_check
            _
          $region134: #{tpu_custom_call.1} parent=63 // pred_check_branch
            %489 = sbr.rel (%p486) target = $region136
          $region135: #{tpu_custom_call.1} parent=63 // pred_region
            %s504 = sand.u32 16, 7
            %p505 = scmp.eq.s32.totalorder %s504, 0
            // Predicated region
            $region148: #{tpu_custom_call.1} parent=135 // pred_check
              %p506 = pneg %p505
            $region149: #{tpu_custom_call.1} parent=135 // pred_check_branch
              %508 = sbr.rel (%p506) target = $region151
            $region150: #{tpu_custom_call.1} parent=135 // pred_region
              loop: start=0, step=1, limit=1
              $region152: #{tpu_custom_call.1} parent=150 // loop_pre_header
                _
              $region153: #{tpu_custom_call.1} parent=150 // loop_header
                %s510 = sphi 0, %s514
                %p511 = scmp.ge.s32.totalorder %s510, 1
                %s515 = sphi %s12, %s12
                %s516 = sphi [#allocation7], [#allocation7]
              $region154: #{tpu_custom_call.1} parent=150 // loop_header_branch
                %513 = sbr.rel (%p511) target = $region158
              $region155: #{tpu_custom_call.1} parent=150 // loop_body
                %v517 = vld [vmem:[%s515] sm:$0xff]
                %518 = vst [vmem:[%s516] sm:$0xff] %v517
                %v519 = vld [vmem:[%s515 + $0x8] sm:$0xff]
                %520 = vst [vmem:[%s516 + $0x8] sm:$0xff] %v519
              $region156: #{tpu_custom_call.1} parent=150 // loop_footer
                %s514 = sadd.s32 1, %s510
              $region157: #{tpu_custom_call.1} parent=150 // loop_footer_branch
                %509 = sbr.rel target = $region153
              $region158: #{tpu_custom_call.1} parent=150 // loop_exit
                _
            $region151: #{tpu_custom_call.1} parent=135 // pred_fallthru
              _
            %p521 = pneg %p505
            // Predicated region
            $region159: #{tpu_custom_call.1} parent=135 // pred_check
              _
            $region160: #{tpu_custom_call.1} parent=135 // pred_check_branch
              %523 = sbr.rel (%p505) target = $region162
            $region161: #{tpu_custom_call.1} parent=135 // pred_region
              %s524 = sand.u32 16, 7
            $region162: #{tpu_custom_call.1} parent=135 // pred_fallthru
              _
          $region136: #{tpu_custom_call.1} parent=63 // pred_fallthru
            _
          // Predicated region
          $region137: #{tpu_custom_call.1} parent=63 // pred_check
            %p490 = pneg %p486
          $region138: #{tpu_custom_call.1} parent=63 // pred_check_branch
            %492 = sbr.rel (%p490) target = $region140
          $region139: #{tpu_custom_call.1} parent=63 // pred_region
            %s493 = sshllo.u32 0, 16
            loop: start=0, step=1, limit=1
            $region141: #{tpu_custom_call.1} parent=139 // loop_pre_header
              _
            $region142: #{tpu_custom_call.1} parent=139 // loop_header
              %s495 = sphi 0, %s499
              %p496 = scmp.ge.s32.totalorder %s495, 1
              %s500 = sphi %s12, %s12
              %s501 = sphi [#allocation7], [#allocation7]
            $region143: #{tpu_custom_call.1} parent=139 // loop_header_branch
              %498 = sbr.rel (%p496) target = $region147
            $region144: #{tpu_custom_call.1} parent=139 // loop_body
              %v502 = vld [vmem:[%s500] sm:%s493]
              %503 = vst [vmem:[%s501] sm:%s493] %v502
            $region145: #{tpu_custom_call.1} parent=139 // loop_footer
              %s499 = sadd.s32 1, %s495
            $region146: #{tpu_custom_call.1} parent=139 // loop_footer_branch
              %494 = sbr.rel target = $region142
            $region147: #{tpu_custom_call.1} parent=139 // loop_exit
              _
          $region140: #{tpu_custom_call.1} parent=63 // pred_fallthru
            _
          // Predicated region
          $region163: #{tpu_custom_call.1} parent=63 // pred_check
            _
          $region164: #{tpu_custom_call.1} parent=63 // pred_check_branch
            %527 = sbr.rel (0) target = $region166
          $region165: #{tpu_custom_call.1} parent=63 // pred_region
            %528 = vsyncadd %s484, 256
          $region166: #{tpu_custom_call.1} parent=63 // pred_fallthru
            _
          %s529 = scalar_lea.sflag [#allocation9], 3
          %p531 = scmp.lt.u32.totalorder 64, 8
          %p532 = pneg %p531
          // Predicated region
          $region167: #{tpu_custom_call.1} parent=63 // pred_check
            _
          $region168: #{tpu_custom_call.1} parent=63 // pred_check_branch
            %534 = sbr.rel (%p531) target = $region170
          $region169: #{tpu_custom_call.1} parent=63 // pred_region
            %s549 = sand.u32 64, 7
            %p550 = scmp.eq.s32.totalorder %s549, 0
            // Predicated region
            $region182: #{tpu_custom_call.1} parent=169 // pred_check
              %p551 = pneg %p550
            $region183: #{tpu_custom_call.1} parent=169 // pred_check_branch
              %553 = sbr.rel (%p551) target = $region185
            $region184: #{tpu_custom_call.1} parent=169 // pred_region
              loop: start=0, step=1, limit=1
              $region186: #{tpu_custom_call.1} parent=184 // loop_pre_header
                _
              $region187: #{tpu_custom_call.1} parent=184 // loop_header
                %s555 = sphi 0, %s559
                %p556 = scmp.ge.s32.totalorder %s555, 1
                %s560 = sphi %s13, %s13
                %s561 = sphi [#allocation8], [#allocation8]
              $region188: #{tpu_custom_call.1} parent=184 // loop_header_branch
                %558 = sbr.rel (%p556) target = $region192
              $region189: #{tpu_custom_call.1} parent=184 // loop_body
                %v562 = vld [vmem:[%s560] sm:$0xff]
                %563 = vst [vmem:[%s561] sm:$0xff] %v562
                %v564 = vld [vmem:[%s560 + $0x8] sm:$0xff]
                %565 = vst [vmem:[%s561 + $0x8] sm:$0xff] %v564
                %v566 = vld [vmem:[%s560 + $0x10] sm:$0xff]
                %567 = vst [vmem:[%s561 + $0x10] sm:$0xff] %v566
                %v568 = vld [vmem:[%s560 + $0x18] sm:$0xff]
                %569 = vst [vmem:[%s561 + $0x18] sm:$0xff] %v568
                %v570 = vld [vmem:[%s560 + $0x20] sm:$0xff]
                %571 = vst [vmem:[%s561 + $0x20] sm:$0xff] %v570
                %v572 = vld [vmem:[%s560 + $0x28] sm:$0xff]
                %573 = vst [vmem:[%s561 + $0x28] sm:$0xff] %v572
                %v574 = vld [vmem:[%s560 + $0x30] sm:$0xff]
                %575 = vst [vmem:[%s561 + $0x30] sm:$0xff] %v574
                %v576 = vld [vmem:[%s560 + $0x38] sm:$0xff]
                %577 = vst [vmem:[%s561 + $0x38] sm:$0xff] %v576
              $region190: #{tpu_custom_call.1} parent=184 // loop_footer
                %s559 = sadd.s32 1, %s555
              $region191: #{tpu_custom_call.1} parent=184 // loop_footer_branch
                %554 = sbr.rel target = $region187
              $region192: #{tpu_custom_call.1} parent=184 // loop_exit
                _
            $region185: #{tpu_custom_call.1} parent=169 // pred_fallthru
              _
            %p578 = pneg %p550
            // Predicated region
            $region193: #{tpu_custom_call.1} parent=169 // pred_check
              _
            $region194: #{tpu_custom_call.1} parent=169 // pred_check_branch
              %580 = sbr.rel (%p550) target = $region196
            $region195: #{tpu_custom_call.1} parent=169 // pred_region
              %s581 = sand.u32 64, 7
            $region196: #{tpu_custom_call.1} parent=169 // pred_fallthru
              _
          $region170: #{tpu_custom_call.1} parent=63 // pred_fallthru
            _
          // Predicated region
          $region171: #{tpu_custom_call.1} parent=63 // pred_check
            %p535 = pneg %p531
          $region172: #{tpu_custom_call.1} parent=63 // pred_check_branch
            %537 = sbr.rel (%p535) target = $region174
          $region173: #{tpu_custom_call.1} parent=63 // pred_region
            %s538 = sshllo.u32 0, 64
            loop: start=0, step=1, limit=1
            $region175: #{tpu_custom_call.1} parent=173 // loop_pre_header
              _
            $region176: #{tpu_custom_call.1} parent=173 // loop_header
              %s540 = sphi 0, %s544
              %p541 = scmp.ge.s32.totalorder %s540, 1
              %s545 = sphi %s13, %s13
              %s546 = sphi [#allocation8], [#allocation8]
            $region177: #{tpu_custom_call.1} parent=173 // loop_header_branch
              %543 = sbr.rel (%p541) target = $region181
            $region178: #{tpu_custom_call.1} parent=173 // loop_body
              %v547 = vld [vmem:[%s545] sm:%s538]
              %548 = vst [vmem:[%s546] sm:%s538] %v547
            $region179: #{tpu_custom_call.1} parent=173 // loop_footer
              %s544 = sadd.s32 1, %s540
            $region180: #{tpu_custom_call.1} parent=173 // loop_footer_branch
              %539 = sbr.rel target = $region176
            $region181: #{tpu_custom_call.1} parent=173 // loop_exit
              _
          $region174: #{tpu_custom_call.1} parent=63 // pred_fallthru
            _
          // Predicated region
          $region197: #{tpu_custom_call.1} parent=63 // pred_check
            _
          $region198: #{tpu_custom_call.1} parent=63 // pred_check_branch
            %584 = sbr.rel (0) target = $region200
          $region199: #{tpu_custom_call.1} parent=63 // pred_region
            %585 = vsyncadd %s529, 1024
          $region200: #{tpu_custom_call.1} parent=63 // pred_fallthru
            _
          %s586 = smul.u32 4, 4
          %s587 = smul.u32 %s586, 1
          %s588 = sshll.u32 %s587, 4
          %589 = dma.done [#allocation9], %s588
          %s590 = sshll.u32 %s587, 4
          %591 = dma.done %s439, %s590
          %s592 = sshll.u32 %s587, 4
          %593 = dma.done %s484, %s592
          %s594 = smul.u32 4, 16
          %s595 = smul.u32 %s594, 1
          %s596 = sshll.u32 %s595, 4
          %597 = dma.done %s529, %s596
          %v598 = vld [vmem:[%s385] sm:$0xff]
          %v599 = vld [vmem:[%s2] sm:$0x1]
          %v600 = vld [vmem:[%s3] sm:$0x1]
          %vm601 = vcmask 261120
          %v602 = vsel %vm601, %v598, 0.0
          %603 = vadd.xlane.f32.xlu0 %v602
          %v604 = vpop.xlane.xlu0 %603
          %v605 = vrcp.pop 32.0
          %v606 = vmul.f32 %v604, %v605
          %v607 = vsub.f32 %v598, %v606
          %v608 = vmul.f32 %v607, %v607
          %v609 = vsel %vm601, %v608, 0.0
          %610 = vadd.xlane.f32.xlu0 %v609
          %v611 = vpop.xlane.xlu0 %610
          %v612 = vmul.f32 %v611, %v605
          %v613 = vadd.f32 %v612, 1e-05
          %v614 = vrsqrt.pop %v613
          %v615 = vmul.f32 %v607, %v614
          %v617 = vlaneseq
          %v618 = vshrl.u32 %v617, 7
          %v619 = vsub.s32 0, %v618
          %v620 = vrot.slane %v599, %v619
          %v622 = vmul.f32 %v615, %v620
          %v624 = vlaneseq
          %v625 = vshrl.u32 %v624, 7
          %v626 = vsub.s32 0, %v625
          %v627 = vrot.slane %v600, %v626
          %v629 = vadd.f32 %v622, %v627
          %v630 = vpack.c.bf16 %v629, %v629
          %v631 = vld [vmem:[#allocation5] sm:$0xff]
          %v632 = vld [vmem:[#allocation5 + $0x8] sm:$0xff]
          %v633 = vld [vmem:[%s4] sm:$0x1]
          %v635 = vlaneseq
          %v636 = vshrl.u32 %v635, 7
          %v637 = vsub.s32 0, %v636
          %v638 = vrot.slane %v633, %v637
          %v641 = vsel %vm601, %v630, 0
          %643 = vmatprep.subr.bf16.mxu0 0
          %644 = vmatpush1.bf16.msra.mxu0 %v631
          %645 = vmatprep.subr.bf16.mxu0 0
          %646 = vmatpush1.bf16.msra.mxu0 %v632
          %647 = vmatprep.subr.bf16.mxu0 0
          %648 = vmatpush1.bf16.msra.mxu0 0
          %649 = vmatprep.subr.bf16.mxu0 0
          %650 = vmatpush1.bf16.msra.mxu0 0
          %651 = vmatprep.subr.bf16.mxu0 0
          %652 = vmatpush1.bf16.msra.mxu0 0
          %653 = vmatprep.subr.bf16.mxu0 0
          %654 = vmatpush1.bf16.msra.mxu0 0
          %655 = vmatprep.subr.bf16.mxu0 0
          %656 = vmatpush1.bf16.msra.mxu0 0
          %657 = vmatprep.subr.bf16.mxu0 0
          %658 = vmatpush1.bf16.msra.mxu0 0
          %659 = vmatprep.subr.bf16.mxu0 0
          %660 = vmatpush1.bf16.msra.mxu0 0
          %661 = vmatprep.subr.bf16.mxu0 0
          %662 = vmatpush1.bf16.msra.mxu0 0
          %663 = vmatprep.subr.bf16.mxu0 0
          %664 = vmatpush1.bf16.msra.mxu0 0
          %665 = vmatprep.subr.bf16.mxu0 0
          %666 = vmatpush1.bf16.msra.mxu0 0
          %667 = vmatprep.subr.bf16.mxu0 0
          %668 = vmatpush1.bf16.msra.mxu0 0
          %669 = vmatprep.subr.bf16.mxu0 0
          %670 = vmatpush1.bf16.msra.mxu0 0
          %671 = vmatprep.subr.bf16.mxu0 0
          %672 = vmatpush1.bf16.msra.mxu0 0
          %673 = vmatprep.subr.bf16.mxu0 0
          %674 = vmatpush1.bf16.msra.mxu0 0
          %675 = vmatprep.mubr.bf16.mxu0 0
          %676 = vmatmul.mubr.bf16.gmra.mrb[0].mxu0 %v641
          %v677 = vpop.f32.mrb[0].mxu0
          %v678 = vadd.f32 %v638, %v677
          %v679 = vpop.f32.mrb[0].mxu0
          %v680 = vpop.f32.mrb[0].mxu0
          %v681 = vpop.f32.mrb[0].mxu0
          %682 = vdwg.mxu0
          %684 = vrot.lane.b32.xlu0 %v678, 120
          %v685 = vpop.permute.xlu0 %684
          %687 = vrot.lane.b32.xlu0 %v678, 112
          %v688 = vpop.permute.xlu0 %687
          %690 = vrot.lane.b32.xlu0 %v678, 104
          %v691 = vpop.permute.xlu0 %690
          %v693 = vcombine.low %v678, %v688
          %v694 = vcombine.high %v678, %v688
          %v696 = vunpack.c.l.s4 1983009808
          %v697 = vunpack.c.0.s8 %v696
          %v698 = vlaneseq
          %v699 = vshrl.u32 %v698, 7
          %v700 = vsub.s32 %v697, %v699
          %v701 = vrot.slane %v693, %v700
          %v703 = vunpack.c.l.s4 1983009808
          %v704 = vunpack.c.0.s8 %v703
          %v705 = vlaneseq
          %v706 = vshrl.u32 %v705, 7
          %v707 = vsub.s32 %v704, %v706
          %v708 = vrot.slane %v694, %v707
          %v709 = vcombine.low %v685, %v691
          %v710 = vcombine.high %v685, %v691
          %v712 = vunpack.c.l.s4 1983009808
          %v713 = vunpack.c.0.s8 %v712
          %v714 = vlaneseq
          %v715 = vshrl.u32 %v714, 7
          %v716 = vsub.s32 %v713, %v715
          %v717 = vrot.slane %v709, %v716
          %v719 = vunpack.c.l.s4 1983009808
          %v720 = vunpack.c.0.s8 %v719
          %v721 = vlaneseq
          %v722 = vshrl.u32 %v721, 7
          %v723 = vsub.s32 %v720, %v722
          %v724 = vrot.slane %v710, %v723
          %v725 = vcombine.low %v701, %v717
          %v726 = vcombine.high %v701, %v717
          %v728 = vunpack.c.l.s4 1934713408
          %v729 = vunpack.c.0.s8 %v728
          %v730 = vlaneseq
          %v731 = vshrl.u32 %v730, 7
          %v732 = vsub.s32 %v729, %v731
          %v733 = vrot.slane %v725, %v732
          %v735 = vunpack.c.l.s4 1934713408
          %v736 = vunpack.c.0.s8 %v735
          %v737 = vlaneseq
          %v738 = vshrl.u32 %v737, 7
          %v739 = vsub.s32 %v736, %v738
          %v740 = vrot.slane %v726, %v739
          %v741 = vcombine.low %v708, %v724
          %v742 = vcombine.high %v708, %v724
          %v744 = vunpack.c.l.s4 1934713408
          %v745 = vunpack.c.0.s8 %v744
          %v746 = vlaneseq
          %v747 = vshrl.u32 %v746, 7
          %v748 = vsub.s32 %v745, %v747
          %v749 = vrot.slane %v741, %v748
          %v751 = vunpack.c.l.s4 1934713408
          %v752 = vunpack.c.0.s8 %v751
          %v753 = vlaneseq
          %v754 = vshrl.u32 %v753, 7
          %v755 = vsub.s32 %v752, %v754
          %v756 = vrot.slane %v742, %v755
          %v757 = vcombine.high %v733, 0.0
          %v758 = vcombine.high %v740, 0.0
          %v759 = vcombine.high %v749, 0.0
          %v760 = vcombine.high %v756, 0.0
          %v761 = vcombine.low %v733, %v740
          %v763 = vunpack.c.l.s4 1983009808
          %v764 = vunpack.c.0.s8 %v763
          %v765 = vlaneseq
          %v766 = vshrl.u32 %v765, 7
          %v767 = vsub.s32 %v764, %v766
          %v768 = vrot.slane %v761, %v767
          %v769 = vcombine.low %v757, %v758
          %v771 = vunpack.c.l.s4 1983009808
          %v772 = vunpack.c.0.s8 %v771
          %v773 = vlaneseq
          %v774 = vshrl.u32 %v773, 7
          %v775 = vsub.s32 %v772, %v774
          %v776 = vrot.slane %v769, %v775
          %v777 = vcombine.low %v749, %v756
          %v779 = vunpack.c.l.s4 1983009808
          %v780 = vunpack.c.0.s8 %v779
          %v781 = vlaneseq
          %v782 = vshrl.u32 %v781, 7
          %v783 = vsub.s32 %v780, %v782
          %v784 = vrot.slane %v777, %v783
          %v785 = vcombine.low %v759, %v760
          %v787 = vunpack.c.l.s4 1983009808
          %v788 = vunpack.c.0.s8 %v787
          %v789 = vlaneseq
          %v790 = vshrl.u32 %v789, 7
          %v791 = vsub.s32 %v788, %v790
          %v792 = vrot.slane %v785, %v791
          %v793 = vcombine.low %v768, %v776
          %v794 = vcombine.high %v768, %v776
          %v796 = vunpack.c.l.s4 1934713408
          %v797 = vunpack.c.0.s8 %v796
          %v798 = vlaneseq
          %v799 = vshrl.u32 %v798, 7
          %v800 = vsub.s32 %v797, %v799
          %v801 = vrot.slane %v793, %v800
          %v803 = vunpack.c.l.s4 1934713408
          %v804 = vunpack.c.0.s8 %v803
          %v805 = vlaneseq
          %v806 = vshrl.u32 %v805, 7
          %v807 = vsub.s32 %v804, %v806
          %v808 = vrot.slane %v794, %v807
          %v809 = vcombine.low %v784, %v792
          %v810 = vcombine.high %v784, %v792
          %v812 = vunpack.c.l.s4 1934713408
          %v813 = vunpack.c.0.s8 %v812
          %v814 = vlaneseq
          %v815 = vshrl.u32 %v814, 7
          %v816 = vsub.s32 %v813, %v815
          %v817 = vrot.slane %v809, %v816
          %v819 = vunpack.c.l.s4 1934713408
          %v820 = vunpack.c.0.s8 %v819
          %v821 = vlaneseq
          %v822 = vshrl.u32 %v821, 7
          %v823 = vsub.s32 %v820, %v822
          %v824 = vrot.slane %v810, %v823
          %v825 = vcombine.low %v801, %v817
          %v826 = vcombine.high %v801, %v817
          %v827 = vcombine.low %v808, %v824
          %v828 = vcombine.high %v808, %v824
          %v829 = vpack.c.bf16 %v825, %v825
          %v830 = vpack.c.bf16 %v826, %v826
          %v831 = vpack.c.bf16 %v827, %v827
          %v832 = vpack.c.bf16 %v828, %v828
          %vm833 = vcmask 60416
          %834 = vst.msk [vmem:[#allocation2] sm:$0xf] %vm833, %v829
          %835 = vst.msk [vmem:[#allocation2 + $0x4] sm:$0xf] %vm833, %v830
          %836 = vst.msk [vmem:[#allocation2 + $0x8] sm:$0xf] %vm833, %v831
          %837 = vst.msk [vmem:[#allocation2 + $0xc] sm:$0xf] %vm833, %v832
          %838 = vrot.lane.b32.xlu0 %v678, 96
          %v839 = vpop.permute.xlu0 %838
          %840 = vrot.lane.b32.xlu0 %v685, 96
          %v841 = vpop.permute.xlu0 %840
          %842 = vrot.lane.b32.xlu0 %v688, 96
          %v843 = vpop.permute.xlu0 %842
          %844 = vrot.lane.b32.xlu0 %v691, 96
          %v845 = vpop.permute.xlu0 %844
          %v850 = vcombine.low %v839, %v843
          %v851 = vcombine.high %v839, %v843
          %v853 = vunpack.c.l.s4 1983009808
          %v854 = vunpack.c.0.s8 %v853
          %v855 = vlaneseq
          %v856 = vshrl.u32 %v855, 7
          %v857 = vsub.s32 %v854, %v856
          %v858 = vrot.slane %v850, %v857
          %v860 = vunpack.c.l.s4 1983009808
          %v861 = vunpack.c.0.s8 %v860
          %v862 = vlaneseq
          %v863 = vshrl.u32 %v862, 7
          %v864 = vsub.s32 %v861, %v863
          %v865 = vrot.slane %v851, %v864
          %v866 = vcombine.low %v841, %v845
          %v867 = vcombine.high %v841, %v845
          %v869 = vunpack.c.l.s4 1983009808
          %v870 = vunpack.c.0.s8 %v869
          %v871 = vlaneseq
          %v872 = vshrl.u32 %v871, 7
          %v873 = vsub.s32 %v870, %v872
          %v874 = vrot.slane %v866, %v873
          %v876 = vunpack.c.l.s4 1983009808
          %v877 = vunpack.c.0.s8 %v876
          %v878 = vlaneseq
          %v879 = vshrl.u32 %v878, 7
          %v880 = vsub.s32 %v877, %v879
          %v881 = vrot.slane %v867, %v880
          %v882 = vcombine.low %v858, %v874
          %v883 = vcombine.high %v858, %v874
          %v885 = vunpack.c.l.s4 1934713408
          %v886 = vunpack.c.0.s8 %v885
          %v887 = vlaneseq
          %v888 = vshrl.u32 %v887, 7
          %v889 = vsub.s32 %v886, %v888
          %v890 = vrot.slane %v882, %v889
          %v892 = vunpack.c.l.s4 1934713408
          %v893 = vunpack.c.0.s8 %v892
          %v894 = vlaneseq
          %v895 = vshrl.u32 %v894, 7
          %v896 = vsub.s32 %v893, %v895
          %v897 = vrot.slane %v883, %v896
          %v898 = vcombine.low %v865, %v881
          %v899 = vcombine.high %v865, %v881
          %v901 = vunpack.c.l.s4 1934713408
          %v902 = vunpack.c.0.s8 %v901
          %v903 = vlaneseq
          %v904 = vshrl.u32 %v903, 7
          %v905 = vsub.s32 %v902, %v904
          %v906 = vrot.slane %v898, %v905
          %v908 = vunpack.c.l.s4 1934713408
          %v909 = vunpack.c.0.s8 %v908
          %v910 = vlaneseq
          %v911 = vshrl.u32 %v910, 7
          %v912 = vsub.s32 %v909, %v911
          %v913 = vrot.slane %v899, %v912
          %v914 = vcombine.high %v890, 0.0
          %v915 = vcombine.high %v897, 0.0
          %v916 = vcombine.high %v906, 0.0
          %v917 = vcombine.high %v913, 0.0
          %v918 = vcombine.low %v890, %v897
          %v920 = vunpack.c.l.s4 1983009808
          %v921 = vunpack.c.0.s8 %v920
          %v922 = vlaneseq
          %v923 = vshrl.u32 %v922, 7
          %v924 = vsub.s32 %v921, %v923
          %v925 = vrot.slane %v918, %v924
          %v926 = vcombine.low %v914, %v915
          %v928 = vunpack.c.l.s4 1983009808
          %v929 = vunpack.c.0.s8 %v928
          %v930 = vlaneseq
          %v931 = vshrl.u32 %v930, 7
          %v932 = vsub.s32 %v929, %v931
          %v933 = vrot.slane %v926, %v932
          %v934 = vcombine.low %v906, %v913
          %v936 = vunpack.c.l.s4 1983009808
          %v937 = vunpack.c.0.s8 %v936
          %v938 = vlaneseq
          %v939 = vshrl.u32 %v938, 7
          %v940 = vsub.s32 %v937, %v939
          %v941 = vrot.slane %v934, %v940
          %v942 = vcombine.low %v916, %v917
          %v944 = vunpack.c.l.s4 1983009808
          %v945 = vunpack.c.0.s8 %v944
          %v946 = vlaneseq
          %v947 = vshrl.u32 %v946, 7
          %v948 = vsub.s32 %v945, %v947
          %v949 = vrot.slane %v942, %v948
          %v950 = vcombine.low %v925, %v933
          %v951 = vcombine.high %v925, %v933
          %v953 = vunpack.c.l.s4 1934713408
          %v954 = vunpack.c.0.s8 %v953
          %v955 = vlaneseq
          %v956 = vshrl.u32 %v955, 7
          %v957 = vsub.s32 %v954, %v956
          %v958 = vrot.slane %v950, %v957
          %v960 = vunpack.c.l.s4 1934713408
          %v961 = vunpack.c.0.s8 %v960
          %v962 = vlaneseq
          %v963 = vshrl.u32 %v962, 7
          %v964 = vsub.s32 %v961, %v963
          %v965 = vrot.slane %v951, %v964
          %v966 = vcombine.low %v941, %v949
          %v967 = vcombine.high %v941, %v949
          %v969 = vunpack.c.l.s4 1934713408
          %v970 = vunpack.c.0.s8 %v969
          %v971 = vlaneseq
          %v972 = vshrl.u32 %v971, 7
          %v973 = vsub.s32 %v970, %v972
          %v974 = vrot.slane %v966, %v973
          %v976 = vunpack.c.l.s4 1934713408
          %v977 = vunpack.c.0.s8 %v976
          %v978 = vlaneseq
          %v979 = vshrl.u32 %v978, 7
          %v980 = vsub.s32 %v977, %v979
          %v981 = vrot.slane %v967, %v980
          %v982 = vcombine.low %v958, %v974
          %v983 = vcombine.high %v958, %v974
          %v984 = vcombine.low %v965, %v981
          %v985 = vcombine.high %v965, %v981
          %v986 = vpack.c.bf16 %v982, %v982
          %v987 = vpack.c.bf16 %v983, %v983
          %v988 = vpack.c.bf16 %v984, %v984
          %v989 = vpack.c.bf16 %v985, %v985
          %990 = vst.msk [vmem:[#allocation3] sm:$0xf] %vm833, %v986
          %991 = vst.msk [vmem:[#allocation3 + $0x4] sm:$0xf] %vm833, %v987
          %992 = vst.msk [vmem:[#allocation3 + $0x8] sm:$0xf] %vm833, %v988
          %993 = vst.msk [vmem:[#allocation3 + $0xc] sm:$0xf] %vm833, %v989
          %994 = vrot.lane.b32.xlu0 %v678, 64
          %v995 = vpop.permute.xlu0 %994
          %996 = vrot.lane.b32.xlu0 %v685, 64
          %v997 = vpop.permute.xlu0 %996
          %998 = vrot.lane.b32.xlu0 %v688, 64
          %v999 = vpop.permute.xlu0 %998
          %1000 = vrot.lane.b32.xlu0 %v691, 64
          %v1001 = vpop.permute.xlu0 %1000
          %v1006 = vcombine.low %v995, %v999
          %v1007 = vcombine.high %v995, %v999
          %v1009 = vunpack.c.l.s4 1983009808
          %v1010 = vunpack.c.0.s8 %v1009
          %v1011 = vlaneseq
          %v1012 = vshrl.u32 %v1011, 7
          %v1013 = vsub.s32 %v1010, %v1012
          %v1014 = vrot.slane %v1006, %v1013
          %v1016 = vunpack.c.l.s4 1983009808
          %v1017 = vunpack.c.0.s8 %v1016
          %v1018 = vlaneseq
          %v1019 = vshrl.u32 %v1018, 7
          %v1020 = vsub.s32 %v1017, %v1019
          %v1021 = vrot.slane %v1007, %v1020
          %v1022 = vcombine.low %v997, %v1001
          %v1023 = vcombine.high %v997, %v1001
          %v1025 = vunpack.c.l.s4 1983009808
          %v1026 = vunpack.c.0.s8 %v1025
          %v1027 = vlaneseq
          %v1028 = vshrl.u32 %v1027, 7
          %v1029 = vsub.s32 %v1026, %v1028
          %v1030 = vrot.slane %v1022, %v1029
          %v1032 = vunpack.c.l.s4 1983009808
          %v1033 = vunpack.c.0.s8 %v1032
          %v1034 = vlaneseq
          %v1035 = vshrl.u32 %v1034, 7
          %v1036 = vsub.s32 %v1033, %v1035
          %v1037 = vrot.slane %v1023, %v1036
          %v1038 = vcombine.low %v1014, %v1030
          %v1039 = vcombine.high %v1014, %v1030
          %v1041 = vunpack.c.l.s4 1934713408
          %v1042 = vunpack.c.0.s8 %v1041
          %v1043 = vlaneseq
          %v1044 = vshrl.u32 %v1043, 7
          %v1045 = vsub.s32 %v1042, %v1044
          %v1046 = vrot.slane %v1038, %v1045
          %v1048 = vunpack.c.l.s4 1934713408
          %v1049 = vunpack.c.0.s8 %v1048
          %v1050 = vlaneseq
          %v1051 = vshrl.u32 %v1050, 7
          %v1052 = vsub.s32 %v1049, %v1051
          %v1053 = vrot.slane %v1039, %v1052
          %v1054 = vcombine.low %v1021, %v1037
          %v1055 = vcombine.high %v1021, %v1037
          %v1057 = vunpack.c.l.s4 1934713408
          %v1058 = vunpack.c.0.s8 %v1057
          %v1059 = vlaneseq
          %v1060 = vshrl.u32 %v1059, 7
          %v1061 = vsub.s32 %v1058, %v1060
          %v1062 = vrot.slane %v1054, %v1061
          %v1064 = vunpack.c.l.s4 1934713408
          %v1065 = vunpack.c.0.s8 %v1064
          %v1066 = vlaneseq
          %v1067 = vshrl.u32 %v1066, 7
          %v1068 = vsub.s32 %v1065, %v1067
          %v1069 = vrot.slane %v1055, %v1068
          %v1070 = vcombine.high %v1046, 0.0
          %v1071 = vcombine.high %v1053, 0.0
          %v1072 = vcombine.high %v1062, 0.0
          %v1073 = vcombine.high %v1069, 0.0
          %v1074 = vcombine.low %v1046, %v1053
          %v1076 = vunpack.c.l.s4 1983009808
          %v1077 = vunpack.c.0.s8 %v1076
          %v1078 = vlaneseq
          %v1079 = vshrl.u32 %v1078, 7
          %v1080 = vsub.s32 %v1077, %v1079
          %v1081 = vrot.slane %v1074, %v1080
          %v1082 = vcombine.low %v1070, %v1071
          %v1084 = vunpack.c.l.s4 1983009808
          %v1085 = vunpack.c.0.s8 %v1084
          %v1086 = vlaneseq
          %v1087 = vshrl.u32 %v1086, 7
          %v1088 = vsub.s32 %v1085, %v1087
          %v1089 = vrot.slane %v1082, %v1088
          %v1090 = vcombine.low %v1062, %v1069
          %v1092 = vunpack.c.l.s4 1983009808
          %v1093 = vunpack.c.0.s8 %v1092
          %v1094 = vlaneseq
          %v1095 = vshrl.u32 %v1094, 7
          %v1096 = vsub.s32 %v1093, %v1095
          %v1097 = vrot.slane %v1090, %v1096
          %v1098 = vcombine.low %v1072, %v1073
          %v1100 = vunpack.c.l.s4 1983009808
          %v1101 = vunpack.c.0.s8 %v1100
          %v1102 = vlaneseq
          %v1103 = vshrl.u32 %v1102, 7
          %v1104 = vsub.s32 %v1101, %v1103
          %v1105 = vrot.slane %v1098, %v1104
          %v1106 = vcombine.low %v1081, %v1089
          %v1107 = vcombine.high %v1081, %v1089
          %v1109 = vunpack.c.l.s4 1934713408
          %v1110 = vunpack.c.0.s8 %v1109
          %v1111 = vlaneseq
          %v1112 = vshrl.u32 %v1111, 7
          %v1113 = vsub.s32 %v1110, %v1112
          %v1114 = vrot.slane %v1106, %v1113
          %v1116 = vunpack.c.l.s4 1934713408
          %v1117 = vunpack.c.0.s8 %v1116
          %v1118 = vlaneseq
          %v1119 = vshrl.u32 %v1118, 7
          %v1120 = vsub.s32 %v1117, %v1119
          %v1121 = vrot.slane %v1107, %v1120
          %v1122 = vcombine.low %v1097, %v1105
          %v1123 = vcombine.high %v1097, %v1105
          %v1125 = vunpack.c.l.s4 1934713408
          %v1126 = vunpack.c.0.s8 %v1125
          %v1127 = vlaneseq
          %v1128 = vshrl.u32 %v1127, 7
          %v1129 = vsub.s32 %v1126, %v1128
          %v1130 = vrot.slane %v1122, %v1129
          %v1132 = vunpack.c.l.s4 1934713408
          %v1133 = vunpack.c.0.s8 %v1132
          %v1134 = vlaneseq
          %v1135 = vshrl.u32 %v1134, 7
          %v1136 = vsub.s32 %v1133, %v1135
          %v1137 = vrot.slane %v1123, %v1136
          %v1138 = vcombine.low %v1114, %v1130
          %v1139 = vcombine.high %v1114, %v1130
          %v1140 = vcombine.low %v1121, %v1137
          %v1141 = vcombine.high %v1121, %v1137
          %v1142 = vpack.c.bf16 %v1138, %v1138
          %v1143 = vpack.c.bf16 %v1139, %v1139
          %v1144 = vpack.c.bf16 %v1140, %v1140
          %v1145 = vpack.c.bf16 %v1141, %v1141
          %1146 = vst.msk [vmem:[#allocation4] sm:$0xf] %vm833, %v1142
          %1147 = vst.msk [vmem:[#allocation4 + $0x4] sm:$0xf] %vm833, %v1143
          %1148 = vst.msk [vmem:[#allocation4 + $0x8] sm:$0xf] %vm833, %v1144
          %1149 = vst.msk [vmem:[#allocation4 + $0xc] sm:$0xf] %vm833, %v1145
        $region64: #{tpu_custom_call.1} parent=59 // pred_fallthru
          _
        %s1150 = smul.u32 %s33, 8
        %s1151 = sshra.s32 %s1150, 3
        %s1152 = sand.u32 %s1150, 7
        %s1153 = smul.addr %s1151, 4
        %s1154 = scalar_lea.vmem [#allocation2], %s1153
        %v1155 = vld [vmem:[%s1154] sm:$0xf]
        %v1156 = vld [vmem:[%s1154 + $0x4] sm:$0xf]
        %v1157 = vld [vmem:[%s1154 + $0x8] sm:$0xf]
        %v1158 = vld [vmem:[%s1154 + $0xc] sm:$0xf]
        %v1159 = vld [vmem:[#allocation3] sm:$0xf]
        %v1160 = vld [vmem:[#allocation3 + $0x4] sm:$0xf]
        %v1161 = vld [vmem:[#allocation3 + $0x8] sm:$0xf]
        %v1162 = vld [vmem:[#allocation3 + $0xc] sm:$0xf]
        %v1163 = vld [vmem:[#allocation4] sm:$0xf]
        %v1164 = vld [vmem:[#allocation4 + $0x4] sm:$0xf]
        %v1165 = vld [vmem:[#allocation4 + $0x8] sm:$0xf]
        %v1166 = vld [vmem:[#allocation4 + $0xc] sm:$0xf]
        %vm1167 = vcmask 64512
        %v1169 = vsel %vm1167, %v1155, 0
        %v1172 = vsel %vm1167, %v1159, 0
        %1174 = vmatprep.subr.bf16.mxu0 0
        %1175 = vmatpush1.bf16.xpose.msra.mxu0 %v1172
        %1176 = vmatprep.subr.bf16.mxu0 0
        %1177 = vmatpush1.bf16.xpose.msra.mxu0 0
        %1178 = vmatprep.subr.bf16.mxu0 0
        %1179 = vmatpush1.bf16.xpose.msra.mxu0 0
        %1180 = vmatprep.subr.bf16.mxu0 0
        %1181 = vmatpush1.bf16.xpose.msra.mxu0 0
        %1182 = vmatprep.subr.bf16.mxu0 0
        %1183 = vmatpush1.bf16.xpose.msra.mxu0 0
        %1184 = vmatprep.subr.bf16.mxu0 0
        %1185 = vmatpush1.bf16.xpose.msra.mxu0 0
        %1186 = vmatprep.subr.bf16.mxu0 0
        %1187 = vmatpush1.bf16.xpose.msra.mxu0 0
        %1188 = vmatprep.subr.bf16.mxu0 0
        %1189 = vmatpush1.bf16.xpose.msra.mxu0 0
        %1190 = vmatprep.subr.bf16.mxu0 0
        %1191 = vmatpush1.bf16.xpose.msra.mxu0 0
        %1192 = vmatprep.subr.bf16.mxu0 0
        %1193 = vmatpush1.bf16.xpose.msra.mxu0 0
        %1194 = vmatprep.subr.bf16.mxu0 0
        %1195 = vmatpush1.bf16.xpose.msra.mxu0 0
        %1196 = vmatprep.subr.bf16.mxu0 0
        %1197 = vmatpush1.bf16.xpose.msra.mxu0 0
        %1198 = vmatprep.subr.bf16.mxu0 0
        %1199 = vmatpush1.bf16.xpose.msra.mxu0 0
        %1200 = vmatprep.subr.bf16.mxu0 0
        %1201 = vmatpush1.bf16.xpose.msra.mxu0 0
        %1202 = vmatprep.subr.bf16.mxu0 0
        %1203 = vmatpush1.bf16.xpose.msra.mxu0 0
        %1204 = vmatprep.subr.bf16.mxu0 0
        %1205 = vmatpush1.bf16.xpose.msra.mxu0 0
        %1206 = vmatprep.mubr.bf16.mxu0 0
        %1207 = vmatmul.mubr.bf16.gmra.mrb[0].mxu0 %v1169
        %v1208 = vpop.f32.mrb[0].mxu0
        %v1209 = vadd.f32 0.0, %v1208
        %v1210 = vpop.f32.mrb[0].mxu0
        %v1211 = vpop.f32.mrb[0].mxu0
        %v1212 = vpop.f32.mrb[0].mxu0
        %1213 = vdwg.mxu0
        %v1215 = vsel %vm1167, %v1156, 0
        %v1218 = vsel %vm1167, %v1160, 0
        %1220 = vmatprep.subr.bf16.mxu0 0
        %1221 = vmatpush1.bf16.xpose.msra.mxu0 %v1218
        %1222 = vmatprep.subr.bf16.mxu0 0
        %1223 = vmatpush1.bf16.xpose.msra.mxu0 0
        %1224 = vmatprep.subr.bf16.mxu0 0
        %1225 = vmatpush1.bf16.xpose.msra.mxu0 0
        %1226 = vmatprep.subr.bf16.mxu0 0
        %1227 = vmatpush1.bf16.xpose.msra.mxu0 0
        %1228 = vmatprep.subr.bf16.mxu0 0
        %1229 = vmatpush1.bf16.xpose.msra.mxu0 0
        %1230 = vmatprep.subr.bf16.mxu0 0
        %1231 = vmatpush1.bf16.xpose.msra.mxu0 0
        %1232 = vmatprep.subr.bf16.mxu0 0
        %1233 = vmatpush1.bf16.xpose.msra.mxu0 0
        %1234 = vmatprep.subr.bf16.mxu0 0
        %1235 = vmatpush1.bf16.xpose.msra.mxu0 0
        %1236 = vmatprep.subr.bf16.mxu0 0
        %1237 = vmatpush1.bf16.xpose.msra.mxu0 0
        %1238 = vmatprep.subr.bf16.mxu0 0
        %1239 = vmatpush1.bf16.xpose.msra.mxu0 0
        %1240 = vmatprep.subr.bf16.mxu0 0
        %1241 = vmatpush1.bf16.xpose.msra.mxu0 0
        %1242 = vmatprep.subr.bf16.mxu0 0
        %1243 = vmatpush1.bf16.xpose.msra.mxu0 0
        %1244 = vmatprep.subr.bf16.mxu0 0
        %1245 = vmatpush1.bf16.xpose.msra.mxu0 0
        %1246 = vmatprep.subr.bf16.mxu0 0
        %1247 = vmatpush1.bf16.xpose.msra.mxu0 0
        %1248 = vmatprep.subr.bf16.mxu0 0
        %1249 = vmatpush1.bf16.xpose.msra.mxu0 0
        %1250 = vmatprep.subr.bf16.mxu0 0
        %1251 = vmatpush1.bf16.xpose.msra.mxu0 0
        %1252 = vmatprep.mubr.bf16.mxu0 0
        %1253 = vmatmul.mubr.bf16.gmra.mrb[0].mxu0 %v1215
        %v1254 = vpop.f32.mrb[0].mxu0
        %v1255 = vadd.f32 0.0, %v1254
        %v1256 = vpop.f32.mrb[0].mxu0
        %v1257 = vpop.f32.mrb[0].mxu0
        %v1258 = vpop.f32.mrb[0].mxu0
        %1259 = vdwg.mxu0
        %v1261 = vsel %vm1167, %v1157, 0
        %v1264 = vsel %vm1167, %v1161, 0
        %1266 = vmatprep.subr.bf16.mxu0 0
        %1267 = vmatpush1.bf16.xpose.msra.mxu0 %v1264
        %1268 = vmatprep.subr.bf16.mxu0 0
        %1269 = vmatpush1.bf16.xpose.msra.mxu0 0
        %1270 = vmatprep.subr.bf16.mxu0 0
        %1271 = vmatpush1.bf16.xpose.msra.mxu0 0
        %1272 = vmatprep.subr.bf16.mxu0 0
        %1273 = vmatpush1.bf16.xpose.msra.mxu0 0
        %1274 = vmatprep.subr.bf16.mxu0 0
        %1275 = vmatpush1.bf16.xpose.msra.mxu0 0
        %1276 = vmatprep.subr.bf16.mxu0 0
        %1277 = vmatpush1.bf16.xpose.msra.mxu0 0
        %1278 = vmatprep.subr.bf16.mxu0 0
        %1279 = vmatpush1.bf16.xpose.msra.mxu0 0
        %1280 = vmatprep.subr.bf16.mxu0 0
        %1281 = vmatpush1.bf16.xpose.msra.mxu0 0
        %1282 = vmatprep.subr.bf16.mxu0 0
        %1283 = vmatpush1.bf16.xpose.msra.mxu0 0
        %1284 = vmatprep.subr.bf16.mxu0 0
        %1285 = vmatpush1.bf16.xpose.msra.mxu0 0
        %1286 = vmatprep.subr.bf16.mxu0 0
        %1287 = vmatpush1.bf16.xpose.msra.mxu0 0
        %1288 = vmatprep.subr.bf16.mxu0 0
        %1289 = vmatpush1.bf16.xpose.msra.mxu0 0
        %1290 = vmatprep.subr.bf16.mxu0 0
        %1291 = vmatpush1.bf16.xpose.msra.mxu0 0
        %1292 = vmatprep.subr.bf16.mxu0 0
        %1293 = vmatpush1.bf16.xpose.msra.mxu0 0
        %1294 = vmatprep.subr.bf16.mxu0 0
        %1295 = vmatpush1.bf16.xpose.msra.mxu0 0
        %1296 = vmatprep.subr.bf16.mxu0 0
        %1297 = vmatpush1.bf16.xpose.msra.mxu0 0
        %1298 = vmatprep.mubr.bf16.mxu0 0
        %1299 = vmatmul.mubr.bf16.gmra.mrb[0].mxu0 %v1261
        %v1300 = vpop.f32.mrb[0].mxu0
        %v1301 = vadd.f32 0.0, %v1300
        %v1302 = vpop.f32.mrb[0].mxu0
        %v1303 = vpop.f32.mrb[0].mxu0
        %v1304 = vpop.f32.mrb[0].mxu0
        %1305 = vdwg.mxu0
        %v1307 = vsel %vm1167, %v1158, 0
        %v1310 = vsel %vm1167, %v1162, 0
        %1312 = vmatprep.subr.bf16.mxu0 0
        %1313 = vmatpush1.bf16.xpose.msra.mxu0 %v1310
        %1314 = vmatprep.subr.bf16.mxu0 0
        %1315 = vmatpush1.bf16.xpose.msra.mxu0 0
        %1316 = vmatprep.subr.bf16.mxu0 0
        %1317 = vmatpush1.bf16.xpose.msra.mxu0 0
        %1318 = vmatprep.subr.bf16.mxu0 0
        %1319 = vmatpush1.bf16.xpose.msra.mxu0 0
        %1320 = vmatprep.subr.bf16.mxu0 0
        %1321 = vmatpush1.bf16.xpose.msra.mxu0 0
        %1322 = vmatprep.subr.bf16.mxu0 0
        %1323 = vmatpush1.bf16.xpose.msra.mxu0 0
        %1324 = vmatprep.subr.bf16.mxu0 0
        %1325 = vmatpush1.bf16.xpose.msra.mxu0 0
        %1326 = vmatprep.subr.bf16.mxu0 0
        %1327 = vmatpush1.bf16.xpose.msra.mxu0 0
        %1328 = vmatprep.subr.bf16.mxu0 0
        %1329 = vmatpush1.bf16.xpose.msra.mxu0 0
        %1330 = vmatprep.subr.bf16.mxu0 0
        %1331 = vmatpush1.bf16.xpose.msra.mxu0 0
        %1332 = vmatprep.subr.bf16.mxu0 0
        %1333 = vmatpush1.bf16.xpose.msra.mxu0 0
        %1334 = vmatprep.subr.bf16.mxu0 0
        %1335 = vmatpush1.bf16.xpose.msra.mxu0 0
        %1336 = vmatprep.subr.bf16.mxu0 0
        %1337 = vmatpush1.bf16.xpose.msra.mxu0 0
        %1338 = vmatprep.subr.bf16.mxu0 0
        %1339 = vmatpush1.bf16.xpose.msra.mxu0 0
        %1340 = vmatprep.subr.bf16.mxu0 0
        %1341 = vmatpush1.bf16.xpose.msra.mxu0 0
        %1342 = vmatprep.subr.bf16.mxu0 0
        %1343 = vmatpush1.bf16.xpose.msra.mxu0 0
        %1344 = vmatprep.mubr.bf16.mxu0 0
        %1345 = vmatmul.mubr.bf16.gmra.mrb[0].mxu0 %v1307
        %v1346 = vpop.f32.mrb[0].mxu0
        %v1347 = vadd.f32 0.0, %v1346
        %v1348 = vpop.f32.mrb[0].mxu0
        %v1349 = vpop.f32.mrb[0].mxu0
        %v1350 = vpop.f32.mrb[0].mxu0
        %1351 = vdwg.mxu0
        %v1352 = vmul.f32 %v1209, 0.35355338
        %v1353 = vmul.f32 %v1255, 0.35355338
        %v1354 = vmul.f32 %v1301, 0.35355338
        %v1355 = vmul.f32 %v1347, 0.35355338
        %v1356 = vld [vmem:[%s389] sm:$0xff]
        %v1357 = vadd.f32 %v1352, %v1356
        %v1358 = vadd.f32 %v1353, %v1356
        %v1359 = vadd.f32 %v1354, %v1356
        %v1360 = vadd.f32 %v1355, %v1356
        %v1361 = vsel %vm1167, %v1357, -inf
        %1362 = vmax.xlane.f32.xlu0 %v1361
        %v1363 = vpop.xlane.xlu0 %1362
        %v1364 = vsel %vm1167, %v1358, -inf
        %1365 = vmax.xlane.f32.xlu0 %v1364
        %v1366 = vpop.xlane.xlu0 %1365
        %v1367 = vsel %vm1167, %v1359, -inf
        %1368 = vmax.xlane.f32.xlu0 %v1367
        %v1369 = vpop.xlane.xlu0 %1368
        %v1370 = vsel %vm1167, %v1360, -inf
        %1371 = vmax.xlane.f32.xlu0 %v1370
        %v1372 = vpop.xlane.xlu0 %1371
        %v1373 = vsub.f32 %v1357, %v1363
        %v1374 = vsub.f32 %v1358, %v1366
        %v1375 = vsub.f32 %v1359, %v1369
        %v1376 = vsub.f32 %v1360, %v1372
        %v1377 = vmul.f32 %v1373, 1.442695
        %v1378 = vpow.pop %v1377
        %v1379 = vmul.f32 %v1374, 1.442695
        %v1380 = vpow.pop %v1379
        %v1381 = vmul.f32 %v1375, 1.442695
        %v1382 = vpow.pop %v1381
        %v1383 = vmul.f32 %v1376, 1.442695
        %v1384 = vpow.pop %v1383
        %v1385 = vsel %vm1167, %v1378, 0.0
        %1386 = vadd.xlane.f32.xlu0 %v1385
        %v1387 = vpop.xlane.xlu0 %1386
        %v1388 = vsel %vm1167, %v1380, 0.0
        %1389 = vadd.xlane.f32.xlu0 %v1388
        %v1390 = vpop.xlane.xlu0 %1389
        %v1391 = vsel %vm1167, %v1382, 0.0
        %1392 = vadd.xlane.f32.xlu0 %v1391
        %v1393 = vpop.xlane.xlu0 %1392
        %v1394 = vsel %vm1167, %v1384, 0.0
        %1395 = vadd.xlane.f32.xlu0 %v1394
        %v1396 = vpop.xlane.xlu0 %1395
        %v1397 = vrcp.pop %v1387
        %v1398 = vrcp.pop %v1390
        %v1399 = vrcp.pop %v1393
        %v1400 = vrcp.pop %v1396
        %v1401 = vmul.f32 %v1378, %v1397
        %v1402 = vmul.f32 %v1380, %v1398
        %v1403 = vmul.f32 %v1382, %v1399
        %v1404 = vmul.f32 %v1384, %v1400
        %v1405 = vpack.c.bf16 %v1401, %v1401
        %v1406 = vpack.c.bf16 %v1402, %v1402
        %v1407 = vpack.c.bf16 %v1403, %v1403
        %v1408 = vpack.c.bf16 %v1404, %v1404
        %v1410 = vsel %vm1167, %v1405, 0
        %vm1412 = vcmask 1043456
        %v1414 = vsel %vm1412, %v1163, 0
        %1416 = vmatprep.subr.bf16.mxu0 0
        %1417 = vmatpush1.bf16.msra.mxu0 %v1414
        %1418 = vmatprep.subr.bf16.mxu0 0
        %1419 = vmatpush1.bf16.msra.mxu0 0
        %1420 = vmatprep.subr.bf16.mxu0 0
        %1421 = vmatpush1.bf16.msra.mxu0 0
        %1422 = vmatprep.subr.bf16.mxu0 0
        %1423 = vmatpush1.bf16.msra.mxu0 0
        %1424 = vmatprep.subr.bf16.mxu0 0
        %1425 = vmatpush1.bf16.msra.mxu0 0
        %1426 = vmatprep.subr.bf16.mxu0 0
        %1427 = vmatpush1.bf16.msra.mxu0 0
        %1428 = vmatprep.subr.bf16.mxu0 0
        %1429 = vmatpush1.bf16.msra.mxu0 0
        %1430 = vmatprep.subr.bf16.mxu0 0
        %1431 = vmatpush1.bf16.msra.mxu0 0
        %1432 = vmatprep.subr.bf16.mxu0 0
        %1433 = vmatpush1.bf16.msra.mxu0 0
        %1434 = vmatprep.subr.bf16.mxu0 0
        %1435 = vmatpush1.bf16.msra.mxu0 0
        %1436 = vmatprep.subr.bf16.mxu0 0
        %1437 = vmatpush1.bf16.msra.mxu0 0
        %1438 = vmatprep.subr.bf16.mxu0 0
        %1439 = vmatpush1.bf16.msra.mxu0 0
        %1440 = vmatprep.subr.bf16.mxu0 0
        %1441 = vmatpush1.bf16.msra.mxu0 0
        %1442 = vmatprep.subr.bf16.mxu0 0
        %1443 = vmatpush1.bf16.msra.mxu0 0
        %1444 = vmatprep.subr.bf16.mxu0 0
        %1445 = vmatpush1.bf16.msra.mxu0 0
        %1446 = vmatprep.subr.bf16.mxu0 0
        %1447 = vmatpush1.bf16.msra.mxu0 0
        %1448 = vmatprep.mubr.bf16.mxu0 0
        %1449 = vmatmul.mubr.bf16.gmra.mrb[0].mxu0 %v1410
        %v1450 = vpop.f32.mrb[0].mxu0
        %v1451 = vadd.f32 0.0, %v1450
        %v1452 = vpop.f32.mrb[0].mxu0
        %v1453 = vpop.f32.mrb[0].mxu0
        %v1454 = vpop.f32.mrb[0].mxu0
        %1455 = vdwg.mxu0
        %v1457 = vsel %vm1167, %v1406, 0
        %v1460 = vsel %vm1412, %v1164, 0
        %1462 = vmatprep.subr.bf16.mxu0 0
        %1463 = vmatpush1.bf16.msra.mxu0 %v1460
        %1464 = vmatprep.subr.bf16.mxu0 0
        %1465 = vmatpush1.bf16.msra.mxu0 0
        %1466 = vmatprep.subr.bf16.mxu0 0
        %1467 = vmatpush1.bf16.msra.mxu0 0
        %1468 = vmatprep.subr.bf16.mxu0 0
        %1469 = vmatpush1.bf16.msra.mxu0 0
        %1470 = vmatprep.subr.bf16.mxu0 0
        %1471 = vmatpush1.bf16.msra.mxu0 0
        %1472 = vmatprep.subr.bf16.mxu0 0
        %1473 = vmatpush1.bf16.msra.mxu0 0
        %1474 = vmatprep.subr.bf16.mxu0 0
        %1475 = vmatpush1.bf16.msra.mxu0 0
        %1476 = vmatprep.subr.bf16.mxu0 0
        %1477 = vmatpush1.bf16.msra.mxu0 0
        %1478 = vmatprep.subr.bf16.mxu0 0
        %1479 = vmatpush1.bf16.msra.mxu0 0
        %1480 = vmatprep.subr.bf16.mxu0 0
        %1481 = vmatpush1.bf16.msra.mxu0 0
        %1482 = vmatprep.subr.bf16.mxu0 0
        %1483 = vmatpush1.bf16.msra.mxu0 0
        %1484 = vmatprep.subr.bf16.mxu0 0
        %1485 = vmatpush1.bf16.msra.mxu0 0
        %1486 = vmatprep.subr.bf16.mxu0 0
        %1487 = vmatpush1.bf16.msra.mxu0 0
        %1488 = vmatprep.subr.bf16.mxu0 0
        %1489 = vmatpush1.bf16.msra.mxu0 0
        %1490 = vmatprep.subr.bf16.mxu0 0
        %1491 = vmatpush1.bf16.msra.mxu0 0
        %1492 = vmatprep.subr.bf16.mxu0 0
        %1493 = vmatpush1.bf16.msra.mxu0 0
        %1494 = vmatprep.mubr.bf16.mxu0 0
        %1495 = vmatmul.mubr.bf16.gmra.mrb[0].mxu0 %v1457
        %v1496 = vpop.f32.mrb[0].mxu0
        %v1497 = vadd.f32 0.0, %v1496
        %v1498 = vpop.f32.mrb[0].mxu0
        %v1499 = vpop.f32.mrb[0].mxu0
        %v1500 = vpop.f32.mrb[0].mxu0
        %1501 = vdwg.mxu0
        %v1503 = vsel %vm1167, %v1407, 0
        %v1506 = vsel %vm1412, %v1165, 0
        %1508 = vmatprep.subr.bf16.mxu0 0
        %1509 = vmatpush1.bf16.msra.mxu0 %v1506
        %1510 = vmatprep.subr.bf16.mxu0 0
        %1511 = vmatpush1.bf16.msra.mxu0 0
        %1512 = vmatprep.subr.bf16.mxu0 0
        %1513 = vmatpush1.bf16.msra.mxu0 0
        %1514 = vmatprep.subr.bf16.mxu0 0
        %1515 = vmatpush1.bf16.msra.mxu0 0
        %1516 = vmatprep.subr.bf16.mxu0 0
        %1517 = vmatpush1.bf16.msra.mxu0 0
        %1518 = vmatprep.subr.bf16.mxu0 0
        %1519 = vmatpush1.bf16.msra.mxu0 0
        %1520 = vmatprep.subr.bf16.mxu0 0
        %1521 = vmatpush1.bf16.msra.mxu0 0
        %1522 = vmatprep.subr.bf16.mxu0 0
        %1523 = vmatpush1.bf16.msra.mxu0 0
        %1524 = vmatprep.subr.bf16.mxu0 0
        %1525 = vmatpush1.bf16.msra.mxu0 0
        %1526 = vmatprep.subr.bf16.mxu0 0
        %1527 = vmatpush1.bf16.msra.mxu0 0
        %1528 = vmatprep.subr.bf16.mxu0 0
        %1529 = vmatpush1.bf16.msra.mxu0 0
        %1530 = vmatprep.subr.bf16.mxu0 0
        %1531 = vmatpush1.bf16.msra.mxu0 0
        %1532 = vmatprep.subr.bf16.mxu0 0
        %1533 = vmatpush1.bf16.msra.mxu0 0
        %1534 = vmatprep.subr.bf16.mxu0 0
        %1535 = vmatpush1.bf16.msra.mxu0 0
        %1536 = vmatprep.subr.bf16.mxu0 0
        %1537 = vmatpush1.bf16.msra.mxu0 0
        %1538 = vmatprep.subr.bf16.mxu0 0
        %1539 = vmatpush1.bf16.msra.mxu0 0
        %1540 = vmatprep.mubr.bf16.mxu0 0
        %1541 = vmatmul.mubr.bf16.gmra.mrb[0].mxu0 %v1503
        %v1542 = vpop.f32.mrb[0].mxu0
        %v1543 = vadd.f32 0.0, %v1542
        %v1544 = vpop.f32.mrb[0].mxu0
        %v1545 = vpop.f32.mrb[0].mxu0
        %v1546 = vpop.f32.mrb[0].mxu0
        %1547 = vdwg.mxu0
        %v1549 = vsel %vm1167, %v1408, 0
        %v1552 = vsel %vm1412, %v1166, 0
        %1554 = vmatprep.subr.bf16.mxu0 0
        %1555 = vmatpush1.bf16.msra.mxu0 %v1552
        %1556 = vmatprep.subr.bf16.mxu0 0
        %1557 = vmatpush1.bf16.msra.mxu0 0
        %1558 = vmatprep.subr.bf16.mxu0 0
        %1559 = vmatpush1.bf16.msra.mxu0 0
        %1560 = vmatprep.subr.bf16.mxu0 0
        %1561 = vmatpush1.bf16.msra.mxu0 0
        %1562 = vmatprep.subr.bf16.mxu0 0
        %1563 = vmatpush1.bf16.msra.mxu0 0
        %1564 = vmatprep.subr.bf16.mxu0 0
        %1565 = vmatpush1.bf16.msra.mxu0 0
        %1566 = vmatprep.subr.bf16.mxu0 0
        %1567 = vmatpush1.bf16.msra.mxu0 0
        %1568 = vmatprep.subr.bf16.mxu0 0
        %1569 = vmatpush1.bf16.msra.mxu0 0
        %1570 = vmatprep.subr.bf16.mxu0 0
        %1571 = vmatpush1.bf16.msra.mxu0 0
        %1572 = vmatprep.subr.bf16.mxu0 0
        %1573 = vmatpush1.bf16.msra.mxu0 0
        %1574 = vmatprep.subr.bf16.mxu0 0
        %1575 = vmatpush1.bf16.msra.mxu0 0
        %1576 = vmatprep.subr.bf16.mxu0 0
        %1577 = vmatpush1.bf16.msra.mxu0 0
        %1578 = vmatprep.subr.bf16.mxu0 0
        %1579 = vmatpush1.bf16.msra.mxu0 0
        %1580 = vmatprep.subr.bf16.mxu0 0
        %1581 = vmatpush1.bf16.msra.mxu0 0
        %1582 = vmatprep.subr.bf16.mxu0 0
        %1583 = vmatpush1.bf16.msra.mxu0 0
        %1584 = vmatprep.subr.bf16.mxu0 0
        %1585 = vmatpush1.bf16.msra.mxu0 0
        %1586 = vmatprep.mubr.bf16.mxu0 0
        %1587 = vmatmul.mubr.bf16.gmra.mrb[0].mxu0 %v1549
        %v1588 = vpop.f32.mrb[0].mxu0
        %v1589 = vadd.f32 0.0, %v1588
        %v1590 = vpop.f32.mrb[0].mxu0
        %v1591 = vpop.f32.mrb[0].mxu0
        %v1592 = vpop.f32.mrb[0].mxu0
        %1593 = vdwg.mxu0
        %v1594 = vcombine.low %v1451, %v1543
        %v1595 = vcombine.high %v1451, %v1543
        %v1597 = vunpack.c.l.s4 1983009808
        %v1598 = vunpack.c.0.s8 %v1597
        %v1599 = vlaneseq
        %v1600 = vshrl.u32 %v1599, 7
        %v1601 = vsub.s32 %v1598, %v1600
        %v1602 = vrot.slane %v1594, %v1601
        %v1604 = vunpack.c.l.s4 1983009808
        %v1605 = vunpack.c.0.s8 %v1604
        %v1606 = vlaneseq
        %v1607 = vshrl.u32 %v1606, 7
        %v1608 = vsub.s32 %v1605, %v1607
        %v1609 = vrot.slane %v1595, %v1608
        %v1610 = vcombine.low %v1497, %v1589
        %v1611 = vcombine.high %v1497, %v1589
        %v1613 = vunpack.c.l.s4 1983009808
        %v1614 = vunpack.c.0.s8 %v1613
        %v1615 = vlaneseq
        %v1616 = vshrl.u32 %v1615, 7
        %v1617 = vsub.s32 %v1614, %v1616
        %v1618 = vrot.slane %v1610, %v1617
        %v1620 = vunpack.c.l.s4 1983009808
        %v1621 = vunpack.c.0.s8 %v1620
        %v1622 = vlaneseq
        %v1623 = vshrl.u32 %v1622, 7
        %v1624 = vsub.s32 %v1621, %v1623
        %v1625 = vrot.slane %v1611, %v1624
        %v1626 = vcombine.low %v1602, %v1618
        %v1627 = vcombine.high %v1602, %v1618
        %v1629 = vunpack.c.l.s4 1934713408
        %v1630 = vunpack.c.0.s8 %v1629
        %v1631 = vlaneseq
        %v1632 = vshrl.u32 %v1631, 7
        %v1633 = vsub.s32 %v1630, %v1632
        %v1634 = vrot.slane %v1626, %v1633
        %v1636 = vunpack.c.l.s4 1934713408
        %v1637 = vunpack.c.0.s8 %v1636
        %v1638 = vlaneseq
        %v1639 = vshrl.u32 %v1638, 7
        %v1640 = vsub.s32 %v1637, %v1639
        %v1641 = vrot.slane %v1627, %v1640
        %v1642 = vcombine.low %v1609, %v1625
        %v1643 = vcombine.high %v1609, %v1625
        %v1645 = vunpack.c.l.s4 1934713408
        %v1646 = vunpack.c.0.s8 %v1645
        %v1647 = vlaneseq
        %v1648 = vshrl.u32 %v1647, 7
        %v1649 = vsub.s32 %v1646, %v1648
        %v1650 = vrot.slane %v1642, %v1649
        %v1652 = vunpack.c.l.s4 1934713408
        %v1653 = vunpack.c.0.s8 %v1652
        %v1654 = vlaneseq
        %v1655 = vshrl.u32 %v1654, 7
        %v1656 = vsub.s32 %v1653, %v1655
        %v1657 = vrot.slane %v1643, %v1656
        %v1658 = vcombine.high %v1634, 0.0
        %v1659 = vcombine.high %v1641, 0.0
        %v1660 = vcombine.high %v1650, 0.0
        %v1661 = vcombine.high %v1657, 0.0
        %v1662 = vcombine.low %v1634, %v1641
        %v1664 = vunpack.c.l.s4 1983009808
        %v1665 = vunpack.c.0.s8 %v1664
        %v1666 = vlaneseq
        %v1667 = vshrl.u32 %v1666, 7
        %v1668 = vsub.s32 %v1665, %v1667
        %v1669 = vrot.slane %v1662, %v1668
        %v1670 = vcombine.low %v1658, %v1659
        %v1672 = vunpack.c.l.s4 1983009808
        %v1673 = vunpack.c.0.s8 %v1672
        %v1674 = vlaneseq
        %v1675 = vshrl.u32 %v1674, 7
        %v1676 = vsub.s32 %v1673, %v1675
        %v1677 = vrot.slane %v1670, %v1676
        %v1678 = vcombine.low %v1650, %v1657
        %v1680 = vunpack.c.l.s4 1983009808
        %v1681 = vunpack.c.0.s8 %v1680
        %v1682 = vlaneseq
        %v1683 = vshrl.u32 %v1682, 7
        %v1684 = vsub.s32 %v1681, %v1683
        %v1685 = vrot.slane %v1678, %v1684
        %v1686 = vcombine.low %v1660, %v1661
        %v1688 = vunpack.c.l.s4 1983009808
        %v1689 = vunpack.c.0.s8 %v1688
        %v1690 = vlaneseq
        %v1691 = vshrl.u32 %v1690, 7
        %v1692 = vsub.s32 %v1689, %v1691
        %v1693 = vrot.slane %v1686, %v1692
        %v1694 = vcombine.low %v1669, %v1677
        %v1695 = vcombine.high %v1669, %v1677
        %v1697 = vunpack.c.l.s4 1934713408
        %v1698 = vunpack.c.0.s8 %v1697
        %v1699 = vlaneseq
        %v1700 = vshrl.u32 %v1699, 7
        %v1701 = vsub.s32 %v1698, %v1700
        %v1702 = vrot.slane %v1694, %v1701
        %v1704 = vunpack.c.l.s4 1934713408
        %v1705 = vunpack.c.0.s8 %v1704
        %v1706 = vlaneseq
        %v1707 = vshrl.u32 %v1706, 7
        %v1708 = vsub.s32 %v1705, %v1707
        %v1709 = vrot.slane %v1695, %v1708
        %v1710 = vcombine.low %v1685, %v1693
        %v1711 = vcombine.high %v1685, %v1693
        %v1713 = vunpack.c.l.s4 1934713408
        %v1714 = vunpack.c.0.s8 %v1713
        %v1715 = vlaneseq
        %v1716 = vshrl.u32 %v1715, 7
        %v1717 = vsub.s32 %v1714, %v1716
        %v1718 = vrot.slane %v1710, %v1717
        %v1720 = vunpack.c.l.s4 1934713408
        %v1721 = vunpack.c.0.s8 %v1720
        %v1722 = vlaneseq
        %v1723 = vshrl.u32 %v1722, 7
        %v1724 = vsub.s32 %v1721, %v1723
        %v1725 = vrot.slane %v1711, %v1724
        %v1726 = vcombine.low %v1702, %v1718
        %v1727 = vcombine.high %v1702, %v1718
        %v1728 = vcombine.low %v1709, %v1725
        %v1729 = vcombine.high %v1709, %v1725
        %1731 = vrot.lane.b32.xlu0 %v1727, 8
        %v1732 = vpop.permute.xlu0 %1731
        %1735 = vrot.lane.b32.xlu0 %v1728, 16
        %v1736 = vpop.permute.xlu0 %1735
        %1739 = vrot.lane.b32.xlu0 %v1729, 24
        %v1740 = vpop.permute.xlu0 %1739
        %v1742 = vsel %vm1167, %v1726, %v1732
        %vm1743 = vcmask 130048
        %v1744 = vsel %vm1743, %v1742, %v1736
        %vm1745 = vcmask 195584
        %v1746 = vsel %vm1745, %v1744, %v1740
        %v1747 = vpack.c.bf16 %v1746, %v1746
        %v1748 = vld [vmem:[#allocation6] sm:$0xff]
        %v1749 = vld [vmem:[#allocation6 + $0x8] sm:$0xff]
        %v1750 = vld [vmem:[%s5] sm:$0x1]
        %v1752 = vlaneseq
        %v1753 = vshrl.u32 %v1752, 7
        %v1754 = vsub.s32 0, %v1753
        %v1755 = vrot.slane %v1750, %v1754
        %vm1757 = vcmask 261120
        %v1759 = vsel %vm1757, %v1747, 0
        %1761 = vmatprep.subr.bf16.mxu0 0
        %1762 = vmatpush1.bf16.msra.mxu0 %v1748
        %1763 = vmatprep.subr.bf16.mxu0 0
        %1764 = vmatpush1.bf16.msra.mxu0 %v1749
        %1765 = vmatprep.subr.bf16.mxu0 0
        %1766 = vmatpush1.bf16.msra.mxu0 0
        %1767 = vmatprep.subr.bf16.mxu0 0
        %1768 = vmatpush1.bf16.msra.mxu0 0
        %1769 = vmatprep.subr.bf16.mxu0 0
        %1770 = vmatpush1.bf16.msra.mxu0 0
        %1771 = vmatprep.subr.bf16.mxu0 0
        %1772 = vmatpush1.bf16.msra.mxu0 0
        %1773 = vmatprep.subr.bf16.mxu0 0
        %1774 = vmatpush1.bf16.msra.mxu0 0
        %1775 = vmatprep.subr.bf16.mxu0 0
        %1776 = vmatpush1.bf16.msra.mxu0 0
        %1777 = vmatprep.subr.bf16.mxu0 0
        %1778 = vmatpush1.bf16.msra.mxu0 0
        %1779 = vmatprep.subr.bf16.mxu0 0
        %1780 = vmatpush1.bf16.msra.mxu0 0
        %1781 = vmatprep.subr.bf16.mxu0 0
        %1782 = vmatpush1.bf16.msra.mxu0 0
        %1783 = vmatprep.subr.bf16.mxu0 0
        %1784 = vmatpush1.bf16.msra.mxu0 0
        %1785 = vmatprep.subr.bf16.mxu0 0
        %1786 = vmatpush1.bf16.msra.mxu0 0
        %1787 = vmatprep.subr.bf16.mxu0 0
        %1788 = vmatpush1.bf16.msra.mxu0 0
        %1789 = vmatprep.subr.bf16.mxu0 0
        %1790 = vmatpush1.bf16.msra.mxu0 0
        %1791 = vmatprep.subr.bf16.mxu0 0
        %1792 = vmatpush1.bf16.msra.mxu0 0
        %1793 = vmatprep.mubr.bf16.mxu0 0
        %1794 = vmatmul.mubr.bf16.gmra.mrb[0].mxu0 %v1759
        %v1795 = vpop.f32.mrb[0].mxu0
        %v1796 = vadd.f32 %v1755, %v1795
        %v1797 = vpop.f32.mrb[0].mxu0
        %v1798 = vpop.f32.mrb[0].mxu0
        %v1799 = vpop.f32.mrb[0].mxu0
        %1800 = vdwg.mxu0
        %s1801 = scalar_lea.vmem %s385, %s1150
        %v1802 = vld [vmem:[%s1801] sm:$0xff]
        %v1803 = vadd.f32 %v1802, %v1796
        %v1804 = vld [vmem:[%s6] sm:$0x1]
        %v1805 = vld [vmem:[%s7] sm:$0x1]
        %v1806 = vsel %vm1757, %v1803, 0.0
        %1807 = vadd.xlane.f32.xlu0 %v1806
        %v1808 = vpop.xlane.xlu0 %1807
        %v1809 = vrcp.pop 32.0
        %v1810 = vmul.f32 %v1808, %v1809
        %v1811 = vsub.f32 %v1803, %v1810
        %v1812 = vmul.f32 %v1811, %v1811
        %v1813 = vsel %vm1757, %v1812, 0.0
        %1814 = vadd.xlane.f32.xlu0 %v1813
        %v1815 = vpop.xlane.xlu0 %1814
        %v1816 = vmul.f32 %v1815, %v1809
        %v1817 = vadd.f32 %v1816, 1e-05
        %v1818 = vrsqrt.pop %v1817
        %v1819 = vmul.f32 %v1811, %v1818
        %v1821 = vlaneseq
        %v1822 = vshrl.u32 %v1821, 7
        %v1823 = vsub.s32 0, %v1822
        %v1824 = vrot.slane %v1804, %v1823
        %v1826 = vmul.f32 %v1819, %v1824
        %v1828 = vlaneseq
        %v1829 = vshrl.u32 %v1828, 7
        %v1830 = vsub.s32 0, %v1829
        %v1831 = vrot.slane %v1805, %v1830
        %v1833 = vadd.f32 %v1826, %v1831
        %v1834 = vpack.c.bf16 %v1833, %v1833
        %v1835 = vld [vmem:[#allocation7] sm:$0xff]
        %v1836 = vld [vmem:[#allocation7 + $0x8] sm:$0xff]
        %v1837 = vld [vmem:[%s8] sm:$0x1]
        %v1839 = vlaneseq
        %v1840 = vshrl.u32 %v1839, 7
        %v1841 = vsub.s32 0, %v1840
        %v1842 = vrot.slane %v1837, %v1841
        %v1845 = vsel %vm1757, %v1834, 0
        %1847 = vmatprep.subr.bf16.mxu0 0
        %1848 = vmatpush1.bf16.msra.mxu0 %v1835
        %1849 = vmatprep.subr.bf16.mxu0 0
        %1850 = vmatpush1.bf16.msra.mxu0 %v1836
        %1851 = vmatprep.subr.bf16.mxu0 0
        %1852 = vmatpush1.bf16.msra.mxu0 0
        %1853 = vmatprep.subr.bf16.mxu0 0
        %1854 = vmatpush1.bf16.msra.mxu0 0
        %1855 = vmatprep.subr.bf16.mxu0 0
        %1856 = vmatpush1.bf16.msra.mxu0 0
        %1857 = vmatprep.subr.bf16.mxu0 0
        %1858 = vmatpush1.bf16.msra.mxu0 0
        %1859 = vmatprep.subr.bf16.mxu0 0
        %1860 = vmatpush1.bf16.msra.mxu0 0
        %1861 = vmatprep.subr.bf16.mxu0 0
        %1862 = vmatpush1.bf16.msra.mxu0 0
        %1863 = vmatprep.subr.bf16.mxu0 0
        %1864 = vmatpush1.bf16.msra.mxu0 0
        %1865 = vmatprep.subr.bf16.mxu0 0
        %1866 = vmatpush1.bf16.msra.mxu0 0
        %1867 = vmatprep.subr.bf16.mxu0 0
        %1868 = vmatpush1.bf16.msra.mxu0 0
        %1869 = vmatprep.subr.bf16.mxu0 0
        %1870 = vmatpush1.bf16.msra.mxu0 0
        %1871 = vmatprep.subr.bf16.mxu0 0
        %1872 = vmatpush1.bf16.msra.mxu0 0
        %1873 = vmatprep.subr.bf16.mxu0 0
        %1874 = vmatpush1.bf16.msra.mxu0 0
        %1875 = vmatprep.subr.bf16.mxu0 0
        %1876 = vmatpush1.bf16.msra.mxu0 0
        %1877 = vmatprep.subr.bf16.mxu0 0
        %1878 = vmatpush1.bf16.msra.mxu0 0
        %1879 = vmatprep.mubr.bf16.mxu0 0
        %1880 = vmatmul.mubr.bf16.gmra.mrb[0].mxu0 %v1845
        %v1881 = vpop.f32.mrb[0].mxu0
        %v1882 = vadd.f32 %v1842, %v1881
        %v1883 = vpop.f32.mrb[0].mxu0
        %v1884 = vpop.f32.mrb[0].mxu0
        %v1885 = vpop.f32.mrb[0].mxu0
        %1886 = vdwg.mxu0
        %v1887 = vmul.f32 %v1882, 0.5
        %v1888 = vmul.f32 %v1882, 0.044715
        %v1889 = vmul.f32 %v1888, %v1882
        %v1890 = vmul.f32 %v1889, %v1882
        %v1891 = vadd.f32 %v1882, %v1890
        %v1892 = vmul.f32 %v1891, 0.7978846
        %v1893 = vtanh.pop %v1892
        %v1894 = vadd.f32 %v1893, 1.0
        %v1895 = vmul.f32 %v1887, %v1894
        %v1896 = vpack.c.bf16 %v1895, %v1895
        %v1897 = vld [vmem:[#allocation8] sm:$0xff]
        %v1898 = vld [vmem:[#allocation8 + $0x8] sm:$0xff]
        %v1899 = vld [vmem:[#allocation8 + $0x10] sm:$0xff]
        %v1900 = vld [vmem:[#allocation8 + $0x18] sm:$0xff]
        %v1901 = vld [vmem:[#allocation8 + $0x20] sm:$0xff]
        %v1902 = vld [vmem:[#allocation8 + $0x28] sm:$0xff]
        %v1903 = vld [vmem:[#allocation8 + $0x30] sm:$0xff]
        %v1904 = vld [vmem:[#allocation8 + $0x38] sm:$0xff]
        %v1905 = vld [vmem:[%s9] sm:$0x1]
        %v1907 = vlaneseq
        %v1908 = vshrl.u32 %v1907, 7
        %v1909 = vsub.s32 0, %v1908
        %v1910 = vrot.slane %v1905, %v1909
        %1912 = vmatprep.subr.bf16.mxu0 0
        %1913 = vmatpush1.bf16.msra.mxu0 %v1897
        %1914 = vmatprep.subr.bf16.mxu0 0
        %1915 = vmatpush1.bf16.msra.mxu0 %v1898
        %1916 = vmatprep.subr.bf16.mxu0 0
        %1917 = vmatpush1.bf16.msra.mxu0 %v1899
        %1918 = vmatprep.subr.bf16.mxu0 0
        %1919 = vmatpush1.bf16.msra.mxu0 %v1900
        %1920 = vmatprep.subr.bf16.mxu0 0
        %1921 = vmatpush1.bf16.msra.mxu0 %v1901
        %1922 = vmatprep.subr.bf16.mxu0 0
        %1923 = vmatpush1.bf16.msra.mxu0 %v1902
        %1924 = vmatprep.subr.bf16.mxu0 0
        %1925 = vmatpush1.bf16.msra.mxu0 %v1903
        %1926 = vmatprep.subr.bf16.mxu0 0
        %1927 = vmatpush1.bf16.msra.mxu0 %v1904
        %1928 = vmatprep.subr.bf16.mxu0 0
        %1929 = vmatpush1.bf16.msra.mxu0 0
        %1930 = vmatprep.subr.bf16.mxu0 0
        %1931 = vmatpush1.bf16.msra.mxu0 0
        %1932 = vmatprep.subr.bf16.mxu0 0
        %1933 = vmatpush1.bf16.msra.mxu0 0
        %1934 = vmatprep.subr.bf16.mxu0 0
        %1935 = vmatpush1.bf16.msra.mxu0 0
        %1936 = vmatprep.subr.bf16.mxu0 0
        %1937 = vmatpush1.bf16.msra.mxu0 0
        %1938 = vmatprep.subr.bf16.mxu0 0
        %1939 = vmatpush1.bf16.msra.mxu0 0
        %1940 = vmatprep.subr.bf16.mxu0 0
        %1941 = vmatpush1.bf16.msra.mxu0 0
        %1942 = vmatprep.subr.bf16.mxu0 0
        %1943 = vmatpush1.bf16.msra.mxu0 0
        %1944 = vmatprep.mubr.bf16.mxu0 0
        %1945 = vmatmul.mubr.bf16.gmra.mrb[0].mxu0 %v1896
        %v1946 = vpop.f32.mrb[0].mxu0
        %v1947 = vadd.f32 %v1910, %v1946
        %v1948 = vpop.f32.mrb[0].mxu0
        %v1949 = vpop.f32.mrb[0].mxu0
        %v1950 = vpop.f32.mrb[0].mxu0
        %1951 = vdwg.mxu0
        %v1952 = vadd.f32 %v1803, %v1947
        %1953 = vst.msk [vmem:[%s381] sm:$0xff] %vm1757, %v1952
        %s1954 = sand.u32 %s270, 1
        %s1955 = scalar_lea.sflag [#allocation11], %s1954
        %s1956 = sand.u32 %s270, 1
        %s1957 = smul.addr %s1956, 8
        %s1958 = scalar_lea.vmem [#allocation10], %s1957
        // Predicated region
        $region201: #{tpu_custom_call.1} parent=59 // pred_check
          %p1959 = pneg %p280
        $region202: #{tpu_custom_call.1} parent=59 // pred_check_branch
          %1961 = sbr.rel (%p1959) target = $region204
        $region203: #{tpu_custom_call.1} parent=59 // pred_region
          %s1963 = ssub.s32 128, 128
          %1964 = vsyncadd %s1955, %s1963
          %s1965 = sadd.s32 %s33, %s32
          %s1966 = smul.addr %s1965, 128
          %s1967 = scalar_lea.hbm %s14, %s1966
          %s1969 = sshll.u32 %s1958, 4
          %s1970 = int_to_ptr.vmem [resolvable:$true] %s1969
          %1972 = dma.vmem_to_hbm [thread:$0]  %s1970, 128, %s1967, %s1955
        $region204: #{tpu_custom_call.1} parent=59 // pred_fallthru
          _
      $region60: #{tpu_custom_call.1} parent=5 // pred_fallthru
        _
      %p1973 = scmp.le.s32.totalorder 2, %s23
      // Predicated region
      $region205: #{tpu_custom_call.1} parent=5 // pred_check
        %p1974 = pneg %p1973
      $region206: #{tpu_custom_call.1} parent=5 // pred_check_branch
        %1976 = sbr.rel (%p1974) target = $region208
      $region207: #{tpu_custom_call.1} parent=5 // pred_region
        %s1977 = ssub.s32 %s23, 2
        // Predicated region
        $region209: #{tpu_custom_call.1} parent=207 // pred_check
          %p1978 = pneg %p286
        $region210: #{tpu_custom_call.1} parent=207 // pred_check_branch
          %1980 = sbr.rel (%p1978) target = $region212
        $region211: #{tpu_custom_call.1} parent=207 // pred_region
          %s1981 = sand.u32 %s271, 1
          %s1982 = scalar_lea.sflag [#allocation11], %s1981
          %s1983 = sand.u32 %s271, 1
          %s1984 = smul.addr %s1983, 8
          %s1985 = scalar_lea.vmem [#allocation10], %s1984
          %1986 = dma.done %s1982, 128
        $region212: #{tpu_custom_call.1} parent=207 // pred_fallthru
          _
      $region208: #{tpu_custom_call.1} parent=5 // pred_fallthru
        _
    $region6: #{tpu_custom_call.1} parent=1 // loop_footer
      %s27 = sadd.s32 1, %s23
    $region7: #{tpu_custom_call.1} parent=1 // loop_footer_branch
      %22 = sbr.rel target = $region3
    $region8: #{tpu_custom_call.1} parent=1 // loop_exit
      _
    %1987 = vsyncpa [#allocation11], 1
    %s1988 = scalar_lea.sflag [#allocation11], 1
    %1989 = vsyncpa %s1988, 1
  %1990 = vsyncmov [#allocation9]
  %s1991 = vpop.sfrf %1990
  %p1992 = scmp.eq.s32.totalorder %s1991, 0
  %p1993 = pneg %p1992
  %1995 = shalt.err (%p1993)
  %s1996 = scalar_lea.sflag [#allocation9], 1
  %1997 = vsyncmov %s1996
  %s1998 = vpop.sfrf %1997
  %p1999 = scmp.eq.s32.totalorder %s1998, 0
  %p2000 = pneg %p1999
  %2002 = shalt.err (%p2000)
  %s2003 = scalar_lea.sflag [#allocation9], 2
  %2004 = vsyncmov %s2003
  %s2005 = vpop.sfrf %2004
  %p2006 = scmp.eq.s32.totalorder %s2005, 0
  %p2007 = pneg %p2006
  %2009 = shalt.err (%p2007)
  %s2010 = scalar_lea.sflag [#allocation9], 3
  %2011 = vsyncmov %s2010
  %s2012 = vpop.sfrf %2011
  %p2013 = scmp.eq.s32.totalorder %s2012, 0
  %p2014 = pneg %p2013
  %2016 = shalt.err (%p2014)

</llo_original>
